<compile_context>
chip_gen: v6e
topology: v6e:2x2x1
jax: 0.10.0
libtpu: 0.0.40
codegen_flags: <defaults>
</compile_context>

<pallas_src>
import functools
import math

import jax
import jax.numpy as jnp
from jax import lax
from jax.experimental import pallas as pl
from jax.experimental.pallas import tpu as pltpu


def _cross_attn_kernel(ea_ref, src_col_ref, dst_col_ref, dst_row_ref, x_ref,
                       wqkv_ref, bqkv_ref, we1_ref, be1_ref,
                       sum_mat_ref, expand_mat_ref,
                       we_out_ref, wv_out_ref,
                       qkv_scratch, acc_wv, acc_den,
                       *, num_heads, out_dim, clamp):
    f32 = jnp.float32
    HD = num_heads * out_dim
    t = pl.program_id(0)
    n_nodes = x_ref.shape[0]
    tile_e = ea_ref.shape[0]

    # --- first tile: fused Q|K|V projection into persistent scratch, zero accumulators.
    @pl.when(t == 0)
    def _init():
        qkv_scratch[...] = (
            jnp.dot(x_ref[...], wqkv_ref[...], preferred_element_type=f32)
            + bqkv_ref[...])
        acc_wv[...] = jnp.zeros_like(acc_wv)
        acc_den[...] = jnp.zeros_like(acc_den)

    # --- in-kernel one-hot selectors (f32 values 0/1, exact) from int32 edge indices.
    # Padded edges carry index == n_nodes -> all-zero rows/cols -> contribute nothing.
    src_idx = src_col_ref[...]                                         # (tile_e, 1)
    dst_idx = dst_col_ref[...]                                         # (tile_e, 1)
    dst_idx_row = dst_row_ref[...]                                     # (1, tile_e)
    node_iota = lax.broadcasted_iota(jnp.int32, (tile_e, n_nodes), 1)
    sel_src = (node_iota == src_idx).astype(f32)                       # (tile_e, N) gather
    sel_dst = (node_iota == dst_idx).astype(f32)                       # (tile_e, N) gather
    node_iota_t = lax.broadcasted_iota(jnp.int32, (n_nodes, tile_e), 0)
    sel_dst_t = (node_iota_t == dst_idx_row).astype(f32)               # (N, tile_e) scatter

    qkv = qkv_scratch[...]                                             # (N, 3*HD)
    q_nodes = qkv[:, :HD]
    kv_nodes = qkv[:, HD:]                                             # [K | V]

    # Edge projection E1 (bias=True), per edge tile.
    e_edge = (jnp.dot(ea_ref[...], we1_ref[...], preferred_element_type=f32)
              + be1_ref[...])                                          # (tile_e, HD)

    # Fused gathers: K[src] and V[src] in one matmul; Q_h[dst] separately.
    src_kv = jnp.dot(sel_src, kv_nodes, preferred_element_type=f32)    # (tile_e, 2*HD)
    dst_q = jnp.dot(sel_dst, q_nodes, preferred_element_type=f32)      # (tile_e, HD)
    src_k = src_kv[:, :HD]
    src_v = src_kv[:, HD:]

    # score_e = (K[src] * Q[dst]) * E   (attn_product='mul', act=Identity)
    score_e = src_k * dst_q * e_edge                                   # (tile_e, HD)
    we_out_ref[...] = score_e                                          # batch.wE

    # Head-sum via block-diagonal matmul (MXU) instead of strided XLU reduce.
    score_h = jnp.dot(score_e, sum_mat_ref[...], preferred_element_type=f32)  # (tile_e, H)
    score_h = score_h * (1.0 / math.sqrt(out_dim))
    score_h = jnp.clip(score_h, -clamp, clamp)

    # clamp bounds score_h to [-5, 5] -> exp is safe without the per-dst max trick.
    ex = jnp.exp(score_h)                                              # (tile_e, H)
    ex_full = jnp.dot(ex, expand_mat_ref[...], preferred_element_type=f32)  # (tile_e, HD)

    # Fused message: (V[src] + e_t) * exp(score) ; single scatter contraction over edges.
    payload = (src_v + score_e) * ex_full                              # (tile_e, HD)
    acc_wv[...] += jnp.dot(sel_dst_t, payload, preferred_element_type=f32)   # (N, HD)
    acc_den[...] += jnp.dot(sel_dst_t, ex, preferred_element_type=f32)       # (N, H)

    # --- last tile: normalize by the per-node softmax denominator (EUP reciprocal on N*H).
    @pl.when(t == pl.num_programs(0) - 1)
    def _finalize():
        recip = pl.reciprocal(acc_den[...] + 1e-16)                    # (N, H)
        recip_full = jnp.dot(recip, expand_mat_ref[...], preferred_element_type=f32)
        wv_out_ref[...] = acc_wv[...] * recip_full                     # batch.wV


def cross_attention_forward(x, edge_attr, edge_index, params, *,
                            num_heads, out_dim, clamp=5.0, tile_e=128):
    N, in_dim = x.shape
    E = edge_attr.shape[0]
    HD = num_heads * out_dim
    n_tiles = pl.cdiv(E, tile_e)
    E_pad = n_tiles * tile_e
    pad = E_pad - E
    f32 = jnp.float32

    ea_p = jnp.pad(edge_attr.astype(f32), ((0, pad), (0, 0)))
    # Padded edges point at the out-of-range node N -> all-zero one-hot rows in-kernel.
    src_p = jnp.pad(edge_index[0].astype(jnp.int32), (0, pad), constant_values=N)
    dst_p = jnp.pad(edge_index[1].astype(jnp.int32), (0, pad), constant_values=N)
    src_col = src_p[:, None]           # (E_pad, 1)
    dst_col = dst_p[:, None]           # (E_pad, 1)
    dst_row = dst_p[None, :]           # (1, E_pad)

    # Fused Q|K|V weights (K, V have use_bias=False -> zero bias).
    w_qkv = jnp.concatenate([params["Wq"], params["Wk"], params["Wv"]], axis=1)
    b_qkv = jnp.concatenate(
        [params["bq"], jnp.zeros((HD,), f32), jnp.zeros((HD,), f32)])[None, :]
    be1 = params["be1"][None, :]

    # Block-diagonal head-sum / head-broadcast matrices (exact 0/1 entries).
    head_ids = jnp.arange(HD, dtype=jnp.int32) // out_dim
    sum_mat = (head_ids[:, None] == jnp.arange(num_heads, dtype=jnp.int32)[None, :]
               ).astype(f32)                                  # (HD, H)
    expand_mat = sum_mat.T                                    # (H, HD)

    kernel = functools.partial(_cross_attn_kernel,
                               num_heads=num_heads, out_dim=out_dim, clamp=clamp)

    grid_spec = pltpu.PrefetchScalarGridSpec(
        num_scalar_prefetch=0,
        grid=(n_tiles,),
        in_specs=[
            pl.BlockSpec((tile_e, in_dim), lambda e: (e, 0)),   # edge_attr tile
            pl.BlockSpec((tile_e, 1), lambda e: (e, 0)),        # src indices (col)
            pl.BlockSpec((tile_e, 1), lambda e: (e, 0)),        # dst indices (col)
            pl.BlockSpec((1, tile_e), lambda e: (0, e)),        # dst indices (row)
            pl.BlockSpec((N, in_dim), lambda e: (0, 0)),        # node features
            pl.BlockSpec((in_dim, 3 * HD), lambda e: (0, 0)),   # fused W_qkv
            pl.BlockSpec((1, 3 * HD), lambda e: (0, 0)),        # fused b_qkv
            pl.BlockSpec((in_dim, HD), lambda e: (0, 0)),       # W_e1
            pl.BlockSpec((1, HD), lambda e: (0, 0)),            # b_e1
            pl.BlockSpec((HD, num_heads), lambda e: (0, 0)),    # head-sum matrix
            pl.BlockSpec((num_heads, HD), lambda e: (0, 0)),    # head-expand matrix
        ],
        out_specs=(
            pl.BlockSpec((tile_e, HD), lambda e: (e, 0)),       # wE (per-edge)
            pl.BlockSpec((N, HD), lambda e: (0, 0)),            # wV (node-resident)
        ),
        scratch_shapes=[
            pltpu.VMEM((N, 3 * HD), jnp.float32),               # cached Q|K|V
            pltpu.VMEM((N, HD), jnp.float32),                   # unnormalized wV
            pltpu.VMEM((N, num_heads), jnp.float32),            # per-node exp-sum
        ],
    )

    wE, wV = pl.pallas_call(
        kernel,
        out_shape=(jax.ShapeDtypeStruct((E_pad, HD), jnp.float32),
                   jax.ShapeDtypeStruct((N, HD), jnp.float32)),
        grid_spec=grid_spec,
        compiler_params=pltpu.CompilerParams(
            dimension_semantics=("arbitrary",)),
    )(ea_p, src_col, dst_col, dst_row, x.astype(f32),
      w_qkv, b_qkv, params["We1"], be1, sum_mat, expand_mat)

    h_out = wV.reshape(N, num_heads, out_dim)   # batch.wV
    e_out = wE[:E]                               # batch.wE (drop edge padding)
    return h_out, e_out


def _xavier_normal(key, in_dim, out_dim):
    std = math.sqrt(2.0 / (in_dim + out_dim))
    return (std * jax.random.normal(key, (in_dim, out_dim))).astype(jnp.float32)


def _ref_forward(x, edge_attr, edge_index, params, *, num_heads, out_dim, clamp=5.0):
    """Pure-JAX reference mirroring the PyTorch module (node_wise path)."""
    N = x.shape[0]
    src, dst = edge_index[0], edge_index[1]
    Qh = x @ params["Wq"] + params["bq"]
    K = x @ params["Wk"]
    V = x @ params["Wv"]
    Ee = edge_attr @ params["We1"] + params["be1"]
    H, D = num_heads, out_dim
    Qh = Qh.reshape(N, H, D); K = K.reshape(N, H, D); V = V.reshape(N, H, D)
    Ee = Ee.reshape(-1, H, D)
    score = K[src] * Qh[dst]
    score_e = score * Ee
    wE = score_e.reshape(score_e.shape[0], -1)
    score_h = score_e.sum(-1, keepdims=True) / jnp.sqrt(jnp.float32(D))
    score_h = jnp.clip(score_h, -clamp, clamp)
    smax = jax.ops.segment_max(score_h, dst, num_segments=N)
    ex = jnp.exp(score_h - smax[dst])
    ssum = jax.ops.segment_sum(ex, dst, num_segments=N)
    attn = ex / (ssum[dst] + 1e-16)
    msg = V[src] * attn
    wV = jax.ops.segment_sum(msg, dst, num_segments=N)
    wV = wV + jax.ops.segment_sum(score_e * attn, dst, num_segments=N)
    return wV, wE


if __name__ == "__main__":
    key = jax.random.PRNGKey(0)
    k = iter(jax.random.split(key, 16))

    in_dim = 32
    out_dim = 32
    num_heads = 4
    HD = num_heads * out_dim      # 128 -> lane-dense outputs
    N = 64                        # nodes
    E_edges = 200                 # edges (padded to 256 -> 2 edge tiles of 128)

    x = jax.random.normal(next(k), (N, in_dim), dtype=jnp.float32)
    edge_attr = jax.random.normal(next(k), (E_edges, in_dim), dtype=jnp.float32)
    edge_index = jax.random.randint(next(k), (2, E_edges), 0, N, dtype=jnp.int32)

    params = {
        "Wq": _xavier_normal(next(k), in_dim, HD),
        "bq": (0.01 * jax.random.normal(next(k), (HD,))).astype(jnp.float32),
        "Wk": _xavier_normal(next(k), in_dim, HD),   # use_bias=False -> no bias
        "Wv": _xavier_normal(next(k), in_dim, HD),   # use_bias=False -> no bias
        "We1": _xavier_normal(next(k), in_dim, HD),
        "be1": (0.01 * jax.random.normal(next(k), (HD,))).astype(jnp.float32),
    }
    # TODO(synk): masked_graph / graph_wise / share branches (prompt-conditioned paths),
    # dropout>0 and attn_reweight/edge_reweight are not exercised here; only the
    # default node_wise/unconditional forward path.

    h_out, e_out = cross_attention_forward(
        x, edge_attr, edge_index, params,
        num_heads=num_heads, out_dim=out_dim, clamp=5.0, tile_e=128)
    jax.block_until_ready((h_out, e_out))

    h_ref, e_ref = _ref_forward(
        x, edge_attr, edge_index, params,
        num_heads=num_heads, out_dim=out_dim, clamp=5.0)

    assert h_out.shape == (N, num_heads, out_dim)
    assert e_out.shape == (E_edges, HD)
    assert jnp.allclose(h_out, h_ref, atol=1e-4, rtol=1e-4)
    assert jnp.allclose(e_out, e_ref, atol=1e-4, rtol=1e-4)

    print("KERNEL_OK")
</pallas_src>

<mosaic_0001>
module attributes {stable_mosaic.version = 11 : i64} {
  func.func @_cross_attn_kernel(%arg0: i32, %arg1: memref<128x32xf32, #tpu.memory_space<vmem>>, %arg2: memref<128x1xi32, #tpu.memory_space<vmem>>, %arg3: memref<128x1xi32, #tpu.memory_space<vmem>>, %arg4: memref<1x128xi32, #tpu.memory_space<vmem>>, %arg5: memref<64x32xf32, #tpu.memory_space<vmem>>, %arg6: memref<32x384xf32, #tpu.memory_space<vmem>>, %arg7: memref<1x384xf32, #tpu.memory_space<vmem>>, %arg8: memref<32x128xf32, #tpu.memory_space<vmem>>, %arg9: memref<1x128xf32, #tpu.memory_space<vmem>>, %arg10: memref<128x4xf32, #tpu.memory_space<vmem>>, %arg11: memref<4x128xf32, #tpu.memory_space<vmem>>, %arg12: memref<128x128xf32, #tpu.memory_space<vmem>>, %arg13: memref<64x128xf32, #tpu.memory_space<vmem>>, %arg14: memref<64x384xf32, #tpu.memory_space<vmem>>, %arg15: memref<64x128xf32, #tpu.memory_space<vmem>>, %arg16: memref<64x4xf32, #tpu.memory_space<vmem>>) attributes {dimension_semantics = [#tpu.dimension_semantics<arbitrary>], iteration_bounds = array<i64: 2>, scalar_prefetch = 0 : i64, scratch_operands = 3 : i64, tpu.core_type = #tpu.core_type<tc>, window_params = [{transform_indices = @transform_0, window_bounds = array<i64: 128, 32>}, {transform_indices = @transform_1, window_bounds = array<i64: 128, 1>}, {transform_indices = @transform_2, window_bounds = array<i64: 128, 1>}, {transform_indices = @transform_3, window_bounds = array<i64: 1, 128>}, {pipeline_mode = #tpu.pipeline_mode<synchronous>, transform_indices = @transform_4, window_bounds = array<i64: 64, 32>}, {pipeline_mode = #tpu.pipeline_mode<synchronous>, transform_indices = @transform_5, window_bounds = array<i64: 32, 384>}, {pipeline_mode = #tpu.pipeline_mode<synchronous>, transform_indices = @transform_6, window_bounds = array<i64: 1, 384>}, {pipeline_mode = #tpu.pipeline_mode<synchronous>, transform_indices = @transform_7, window_bounds = array<i64: 32, 128>}, {pipeline_mode = #tpu.pipeline_mode<synchronous>, transform_indices = @transform_8, window_bounds = array<i64: 1, 128>}, {pipeline_mode = #tpu.pipeline_mode<synchronous>, transform_indices = @transform_9, window_bounds = array<i64: 128, 4>}, {pipeline_mode = #tpu.pipeline_mode<synchronous>, transform_indices = @transform_10, window_bounds = array<i64: 4, 128>}, {transform_indices = @transform_11, window_bounds = array<i64: 128, 128>}, {pipeline_mode = #tpu.pipeline_mode<synchronous>, transform_indices = @transform_12, window_bounds = array<i64: 64, 128>}]} {
    %c0_i32 = arith.constant 0 : i32
    %0 = arith.cmpi eq, %arg0, %c0_i32 : i32
    %1 = arith.extui %0 : i1 to i32
    %c0_i32_0 = arith.constant 0 : i32
    %2 = arith.cmpi ne, %1, %c0_i32_0 : i32
    scf.if %2 {
      %c0_38 = arith.constant 0 : index
      %c0_39 = arith.constant 0 : index
      %60 = vector.load %arg5[%c0_38, %c0_39] : memref<64x32xf32, #tpu.memory_space<vmem>>, vector<64x32xf32>
      %c0_40 = arith.constant 0 : index
      %c0_41 = arith.constant 0 : index
      %61 = vector.load %arg6[%c0_40, %c0_41] : memref<32x384xf32, #tpu.memory_space<vmem>>, vector<32x384xf32>
      %cst_42 = arith.constant dense<0.000000e+00> : vector<64x384xf32>
      %62 = tpu.matmul %60, %61, %cst_42 {dimension_numbers = #tpu.dot_dimension_numbers<[1], [0], [0], [1], [0, 0, 1, 1], [], []>} : vector<64x32xf32>, vector<32x384xf32>, vector<64x384xf32> -> vector<64x384xf32>
      %c0_43 = arith.constant 0 : index
      %c0_44 = arith.constant 0 : index
      %63 = vector.load %arg7[%c0_43, %c0_44] : memref<1x384xf32, #tpu.memory_space<vmem>>, vector<1x384xf32>
      %64 = vector.broadcast %63 : vector<1x384xf32> to vector<64x384xf32>
      %65 = arith.addf %62, %64 : vector<64x384xf32>
      %c0_45 = arith.constant 0 : index
      %c0_46 = arith.constant 0 : index
      %66 = vector.load %arg14[%c0_45, %c0_46] : memref<64x384xf32, #tpu.memory_space<vmem>>, vector<64x384xf32>
      tpu.vector_store %arg14[%c0_45, %c0_46], %65 {strides = array<i32>} : memref<64x384xf32, #tpu.memory_space<vmem>>, vector<64x384xf32>,
      %cst_47 = arith.constant 0.000000e+00 : f32
      %67 = vector.broadcast %cst_47 : f32 to vector<64x128xf32>
      %c0_48 = arith.constant 0 : index
      %c0_49 = arith.constant 0 : index
      %68 = vector.load %arg15[%c0_48, %c0_49] : memref<64x128xf32, #tpu.memory_space<vmem>>, vector<64x128xf32>
      tpu.vector_store %arg15[%c0_48, %c0_49], %67 {strides = array<i32>} : memref<64x128xf32, #tpu.memory_space<vmem>>, vector<64x128xf32>,
      %cst_50 = arith.constant 0.000000e+00 : f32
      %69 = vector.broadcast %cst_50 : f32 to vector<64x4xf32>
      %c0_51 = arith.constant 0 : index
      %c0_52 = arith.constant 0 : index
      %70 = vector.load %arg16[%c0_51, %c0_52] : memref<64x4xf32, #tpu.memory_space<vmem>>, vector<64x4xf32>
      tpu.vector_store %arg16[%c0_51, %c0_52], %69 {strides = array<i32>} : memref<64x4xf32, #tpu.memory_space<vmem>>, vector<64x4xf32>,
    } else {
    }
    %c0 = arith.constant 0 : index
    %c0_1 = arith.constant 0 : index
    %3 = vector.load %arg2[%c0, %c0_1] : memref<128x1xi32, #tpu.memory_space<vmem>>, vector<128x1xi32>
    %c0_2 = arith.constant 0 : index
    %c0_3 = arith.constant 0 : index
    %4 = vector.load %arg3[%c0_2, %c0_3] : memref<128x1xi32, #tpu.memory_space<vmem>>, vector<128x1xi32>
    %c0_4 = arith.constant 0 : index
    %c0_5 = arith.constant 0 : index
    %5 = vector.load %arg4[%c0_4, %c0_5] : memref<1x128xi32, #tpu.memory_space<vmem>>, vector<1x128xi32>
    %6 = tpu.iota {dimensions = array<i32: 1>} : vector<128x64xi32>
    %7 = vector.broadcast %3 : vector<128x1xi32> to vector<128x64xi32>
    %8 = arith.cmpi eq, %6, %7 : vector<128x64xi32>
    %9 = arith.extui %8 : vector<128x64xi1> to vector<128x64xi32>
    %10 = arith.sitofp %9 : vector<128x64xi32> to vector<128x64xf32>
    %11 = vector.broadcast %4 : vector<128x1xi32> to vector<128x64xi32>
    %12 = arith.cmpi eq, %6, %11 : vector<128x64xi32>
    %13 = arith.extui %12 : vector<128x64xi1> to vector<128x64xi32>
    %14 = arith.sitofp %13 : vector<128x64xi32> to vector<128x64xf32>
    %15 = tpu.iota {dimensions = array<i32: 0>} : vector<64x128xi32>
    %16 = vector.broadcast %5 : vector<1x128xi32> to vector<64x128xi32>
    %17 = arith.cmpi eq, %15, %16 : vector<64x128xi32>
    %18 = arith.extui %17 : vector<64x128xi1> to vector<64x128xi32>
    %19 = arith.sitofp %18 : vector<64x128xi32> to vector<64x128xf32>
    %c0_6 = arith.constant 0 : index
    %c0_7 = arith.constant 0 : index
    %20 = vector.load %arg14[%c0_6, %c0_7] : memref<64x384xf32, #tpu.memory_space<vmem>>, vector<64x384xf32>
    %21 = vector.extract_strided_slice %20 {offsets = [0, 0], sizes = [64, 128], strides = [1, 1]} : vector<64x384xf32> to vector<64x128xf32>
    %22 = vector.extract_strided_slice %20 {offsets = [0, 128], sizes = [64, 256], strides = [1, 1]} : vector<64x384xf32> to vector<64x256xf32>
    %c0_8 = arith.constant 0 : index
    %c0_9 = arith.constant 0 : index
    %23 = vector.load %arg1[%c0_8, %c0_9] : memref<128x32xf32, #tpu.memory_space<vmem>>, vector<128x32xf32>
    %c0_10 = arith.constant 0 : index
    %c0_11 = arith.constant 0 : index
    %24 = vector.load %arg8[%c0_10, %c0_11] : memref<32x128xf32, #tpu.memory_space<vmem>>, vector<32x128xf32>
    %cst = arith.constant dense<0.000000e+00> : vector<128x128xf32>
    %25 = tpu.matmul %23, %24, %cst {dimension_numbers = #tpu.dot_dimension_numbers<[1], [0], [0], [1], [0, 0, 1, 1], [], []>} : vector<128x32xf32>, vector<32x128xf32>, vector<128x128xf32> -> vector<128x128xf32>
    %c0_12 = arith.constant 0 : index
    %c0_13 = arith.constant 0 : index
    %26 = vector.load %arg9[%c0_12, %c0_13] : memref<1x128xf32, #tpu.memory_space<vmem>>, vector<1x128xf32>
    %27 = vector.broadcast %26 : vector<1x128xf32> to vector<128x128xf32>
    %28 = arith.addf %25, %27 : vector<128x128xf32>
    %cst_14 = arith.constant dense<0.000000e+00> : vector<128x256xf32>
    %29 = tpu.matmul %10, %22, %cst_14 {dimension_numbers = #tpu.dot_dimension_numbers<[1], [0], [0], [1], [0, 0, 1, 1], [], []>} : vector<128x64xf32>, vector<64x256xf32>, vector<128x256xf32> -> vector<128x256xf32>
    %cst_15 = arith.constant dense<0.000000e+00> : vector<128x128xf32>
    %30 = tpu.matmul %14, %21, %cst_15 {dimension_numbers = #tpu.dot_dimension_numbers<[1], [0], [0], [1], [0, 0, 1, 1], [], []>} : vector<128x64xf32>, vector<64x128xf32>, vector<128x128xf32> -> vector<128x128xf32>
    %31 = vector.extract_strided_slice %29 {offsets = [0, 0], sizes = [128, 128], strides = [1, 1]} : vector<128x256xf32> to vector<128x128xf32>
    %32 = vector.extract_strided_slice %29 {offsets = [0, 128], sizes = [128, 128], strides = [1, 1]} : vector<128x256xf32> to vector<128x128xf32>
    %33 = arith.mulf %31, %30 : vector<128x128xf32>
    %34 = arith.mulf %33, %28 : vector<128x128xf32>
    %c0_16 = arith.constant 0 : index
    %c0_17 = arith.constant 0 : index
    %35 = vector.load %arg12[%c0_16, %c0_17] : memref<128x128xf32, #tpu.memory_space<vmem>>, vector<128x128xf32>
    tpu.vector_store %arg12[%c0_16, %c0_17], %34 {strides = array<i32>} : memref<128x128xf32, #tpu.memory_space<vmem>>, vector<128x128xf32>,
    %c0_18 = arith.constant 0 : index
    %c0_19 = arith.constant 0 : index
    %36 = vector.load %arg10[%c0_18, %c0_19] : memref<128x4xf32, #tpu.memory_space<vmem>>, vector<128x4xf32>
    %cst_20 = arith.constant dense<0.000000e+00> : vector<128x4xf32>
    %37 = tpu.matmul %34, %36, %cst_20 {dimension_numbers = #tpu.dot_dimension_numbers<[1], [0], [0], [1], [0, 0, 1, 1], [], []>} : vector<128x128xf32>, vector<128x4xf32>, vector<128x4xf32> -> vector<128x4xf32>
    %cst_21 = arith.constant 0.176776692 : f32
    %38 = vector.broadcast %cst_21 : f32 to vector<128x4xf32>
    %39 = arith.mulf %37, %38 : vector<128x4xf32>
    %cst_22 = arith.constant -5.000000e+00 : f32
    %cst_23 = arith.constant 5.000000e+00 : f32
    %40 = vector.broadcast %cst_22 : f32 to vector<128x4xf32>
    %41 = arith.maximumf %40, %39 : vector<128x4xf32>
    %42 = vector.broadcast %cst_23 : f32 to vector<128x4xf32>
    %43 = arith.minimumf %42, %41 : vector<128x4xf32>
    %44 = math.exp %43 : vector<128x4xf32>
    %c0_24 = arith.constant 0 : index
    %c0_25 = arith.constant 0 : index
    %45 = vector.load %arg11[%c0_24, %c0_25] : memref<4x128xf32, #tpu.memory_space<vmem>>, vector<4x128xf32>
    %cst_26 = arith.constant dense<0.000000e+00> : vector<128x128xf32>
    %46 = tpu.matmul %44, %45, %cst_26 {dimension_numbers = #tpu.dot_dimension_numbers<[1], [0], [0], [1], [0, 0, 1, 1], [], []>} : vector<128x4xf32>, vector<4x128xf32>, vector<128x128xf32> -> vector<128x128xf32>
    %47 = arith.addf %32, %34 : vector<128x128xf32>
    %48 = arith.mulf %47, %46 : vector<128x128xf32>
    %c0_27 = arith.constant 0 : index
    %c0_28 = arith.constant 0 : index
    %49 = vector.load %arg15[%c0_27, %c0_28] : memref<64x128xf32, #tpu.memory_space<vmem>>, vector<64x128xf32>
    %cst_29 = arith.constant dense<0.000000e+00> : vector<64x128xf32>
    %50 = tpu.matmul %19, %48, %cst_29 {dimension_numbers = #tpu.dot_dimension_numbers<[1], [0], [0], [1], [0, 0, 1, 1], [], []>} : vector<64x128xf32>, vector<128x128xf32>, vector<64x128xf32> -> vector<64x128xf32>
    %51 = arith.addf %49, %50 : vector<64x128xf32>
    %c0_30 = arith.constant 0 : index
    %c0_31 = arith.constant 0 : index
    %52 = vector.load %arg15[%c0_30, %c0_31] : memref<64x128xf32, #tpu.memory_space<vmem>>, vector<64x128xf32>
    tpu.vector_store %arg15[%c0_30, %c0_31], %51 {strides = array<i32>} : memref<64x128xf32, #tpu.memory_space<vmem>>, vector<64x128xf32>,
    %c0_32 = arith.constant 0 : index
    %c0_33 = arith.constant 0 : index
    %53 = vector.load %arg16[%c0_32, %c0_33] : memref<64x4xf32, #tpu.memory_space<vmem>>, vector<64x4xf32>
    %cst_34 = arith.constant dense<0.000000e+00> : vector<64x4xf32>
    %54 = tpu.matmul %19, %44, %cst_34 {dimension_numbers = #tpu.dot_dimension_numbers<[1], [0], [0], [1], [0, 0, 1, 1], [], []>} : vector<64x128xf32>, vector<128x4xf32>, vector<64x4xf32> -> vector<64x4xf32>
    %55 = arith.addf %53, %54 : vector<64x4xf32>
    %c0_35 = arith.constant 0 : index
    %c0_36 = arith.constant 0 : index
    %56 = vector.load %arg16[%c0_35, %c0_36] : memref<64x4xf32, #tpu.memory_space<vmem>>, vector<64x4xf32>
    tpu.vector_store %arg16[%c0_35, %c0_36], %55 {strides = array<i32>} : memref<64x4xf32, #tpu.memory_space<vmem>>, vector<64x4xf32>,
    %c1_i32 = arith.constant 1 : i32
    %57 = arith.cmpi eq, %arg0, %c1_i32 : i32
    %58 = arith.extui %57 : i1 to i32
    %c0_i32_37 = arith.constant 0 : i32
    %59 = arith.cmpi ne, %58, %c0_i32_37 : i32
    scf.if %59 {
      %c0_38 = arith.constant 0 : index
      %c0_39 = arith.constant 0 : index
      %60 = vector.load %arg16[%c0_38, %c0_39] : memref<64x4xf32, #tpu.memory_space<vmem>>, vector<64x4xf32>
      %cst_40 = arith.constant 1.000000e-16 : f32
      %61 = vector.broadcast %cst_40 : f32 to vector<64x4xf32>
      %62 = arith.addf %60, %61 : vector<64x4xf32>
      %63 = tpu.reciprocal %62 : vector<64x4xf32> -> vector<64x4xf32>
      %c0_41 = arith.constant 0 : index
      %c0_42 = arith.constant 0 : index
      %64 = vector.load %arg11[%c0_41, %c0_42] : memref<4x128xf32, #tpu.memory_space<vmem>>, vector<4x128xf32>
      %cst_43 = arith.constant dense<0.000000e+00> : vector<64x128xf32>
      %65 = tpu.matmul %63, %64, %cst_43 {dimension_numbers = #tpu.dot_dimension_numbers<[1], [0], [0], [1], [0, 0, 1, 1], [], []>} : vector<64x4xf32>, vector<4x128xf32>, vector<64x128xf32> -> vector<64x128xf32>
      %c0_44 = arith.constant 0 : index
      %c0_45 = arith.constant 0 : index
      %66 = vector.load %arg15[%c0_44, %c0_45] : memref<64x128xf32, #tpu.memory_space<vmem>>, vector<64x128xf32>
      %67 = arith.mulf %66, %65 : vector<64x128xf32>
      %c0_46 = arith.constant 0 : index
      %c0_47 = arith.constant 0 : index
      %68 = vector.load %arg13[%c0_46, %c0_47] : memref<64x128xf32, #tpu.memory_space<vmem>>, vector<64x128xf32>
      tpu.vector_store %arg13[%c0_46, %c0_47], %67 {strides = array<i32>} : memref<64x128xf32, #tpu.memory_space<vmem>>, vector<64x128xf32>,
    } else {
    }
    return
  }
  func.func @transform_0(%arg0: i32) -> (i32, i32) {
    %c0_i32 = arith.constant 0 : i32
    %c0_i32_0 = arith.constant 0 : i32
    return %arg0, %c0_i32 : i32, i32
  }
  func.func @transform_1(%arg0: i32) -> (i32, i32) {
    %c0_i32 = arith.constant 0 : i32
    %c0_i32_0 = arith.constant 0 : i32
    return %arg0, %c0_i32 : i32, i32
  }
  func.func @transform_2(%arg0: i32) -> (i32, i32) {
    %c0_i32 = arith.constant 0 : i32
    %c0_i32_0 = arith.constant 0 : i32
    return %arg0, %c0_i32 : i32, i32
  }
  func.func @transform_3(%arg0: i32) -> (i32, i32) {
    %c0_i32 = arith.constant 0 : i32
    %c0_i32_0 = arith.constant 0 : i32
    return %c0_i32, %arg0 : i32, i32
  }
  func.func @transform_4(%arg0: i32) -> (i32, i32) {
    %c0_i32 = arith.constant 0 : i32
    %c0_i32_0 = arith.constant 0 : i32
    %c0_i32_1 = arith.constant 0 : i32
    return %c0_i32, %c0_i32_0 : i32, i32
  }
  func.func @transform_5(%arg0: i32) -> (i32, i32) {
    %c0_i32 = arith.constant 0 : i32
    %c0_i32_0 = arith.constant 0 : i32
    %c0_i32_1 = arith.constant 0 : i32
    return %c0_i32, %c0_i32_0 : i32, i32
  }
  func.func @transform_6(%arg0: i32) -> (i32, i32) {
    %c0_i32 = arith.constant 0 : i32
    %c0_i32_0 = arith.constant 0 : i32
    %c0_i32_1 = arith.constant 0 : i32
    return %c0_i32, %c0_i32_0 : i32, i32
  }
  func.func @transform_7(%arg0: i32) -> (i32, i32) {
    %c0_i32 = arith.constant 0 : i32
    %c0_i32_0 = arith.constant 0 : i32
    %c0_i32_1 = arith.constant 0 : i32
    return %c0_i32, %c0_i32_0 : i32, i32
  }
  func.func @transform_8(%arg0: i32) -> (i32, i32) {
    %c0_i32 = arith.constant 0 : i32
    %c0_i32_0 = arith.constant 0 : i32
    %c0_i32_1 = arith.constant 0 : i32
    return %c0_i32, %c0_i32_0 : i32, i32
  }
  func.func @transform_9(%arg0: i32) -> (i32, i32) {
    %c0_i32 = arith.constant 0 : i32
    %c0_i32_0 = arith.constant 0 : i32
    %c0_i32_1 = arith.constant 0 : i32
    return %c0_i32, %c0_i32_0 : i32, i32
  }
  func.func @transform_10(%arg0: i32) -> (i32, i32) {
    %c0_i32 = arith.constant 0 : i32
    %c0_i32_0 = arith.constant 0 : i32
    %c0_i32_1 = arith.constant 0 : i32
    return %c0_i32, %c0_i32_0 : i32, i32
  }
  func.func @transform_11(%arg0: i32) -> (i32, i32) {
    %c0_i32 = arith.constant 0 : i32
    %c0_i32_0 = arith.constant 0 : i32
    return %arg0, %c0_i32 : i32, i32
  }
  func.func @transform_12(%arg0: i32) -> (i32, i32) {
    %c0_i32 = arith.constant 0 : i32
    %c0_i32_0 = arith.constant 0 : i32
    %c0_i32_1 = arith.constant 0 : i32
    return %c0_i32, %c0_i32_0 : i32, i32
  }
}

</mosaic_0001>

<llo_original>
// kernel: tpu_custom_call.1
$region0: #{tpu_custom_call.1}
  #allocation0 [shape = 'u32[]', space=smem, size = 0x4, offset = 0x4, fixed_abs, tag = 'smem constant byte address 0x4 - core index']
  #allocation1 [shape = 'u32[144,128]{1,0:T(1,128)}', space=vmem, size = 0x12000, scoped, tag = 'internal scratch']
  #allocation2 [shape = 'f32[64,384]{1,0:T(8,128)}', space=vmem, size = 0x18000, scoped, tag = 'scratch operand']
  #allocation3 [shape = 'f32[64,128]{1,0:T(8,128)}', space=vmem, size = 0x8000, scoped, tag = 'scratch operand']
  #allocation4 [shape = 'f32[64,4]{1,0:T(8,128)}', space=vmem, size = 0x8000, scoped, tag = 'scratch operand']
  %s0 = inlined_call_operand.vmem [shape: f32[256,32], index: 0, kind: input, shape index: {}]
  %s1 = inlined_call_operand.vmem [shape: s32[256,1], index: 1, kind: input, shape index: {}]
  %s2 = inlined_call_operand.vmem [shape: s32[256,1], index: 2, kind: input, shape index: {}]
  %s3 = inlined_call_operand.vmem [shape: s32[1,256], index: 3, kind: input, shape index: {}]
  %s4 = inlined_call_operand.vmem [shape: f32[64,32], index: 4, kind: input, shape index: {}]
  %s5 = inlined_call_operand.vmem [shape: f32[32,384], index: 5, kind: input, shape index: {}]
  %s6 = inlined_call_operand.vmem [shape: f32[1,384], index: 6, kind: input, shape index: {}]
  %s7 = inlined_call_operand.vmem [shape: f32[32,128], index: 7, kind: input, shape index: {}]
  %s8 = inlined_call_operand.vmem [shape: f32[1,128], index: 8, kind: input, shape index: {}]
  %s9 = inlined_call_operand.vmem [shape: f32[128,4], index: 9, kind: input, shape index: {}]
  %s10 = inlined_call_operand.vmem [shape: f32[4,128], index: 10, kind: input, shape index: {}]
  %s11 = inlined_call_operand.hbm [shape: f32[256,128], index: 11, kind: output, shape index: {0}]
  %s12 = inlined_call_operand.hbm [shape: f32[64,128], index: 12, kind: output, shape index: {1}]
  %13 = xla_tuple %s11, %s12
  %s14 = sld [smem:[#allocation0]]
  $region93: #{tpu_custom_call.1} parent=0
    _
  %s16 = ssub.s32 1, %s14
  %s17 = scalar_select 0, %s16, %s14
  $region1: #{tpu_custom_call.1} parent=0
    #allocation5 [shape = 'u8[131072]{0}', space=vmem, size = 0x20000, scoped, tag = 'output window, operand 0']
    #allocation6 [shape = 's32[2]{0}', space=sflag, size = 0x8, scoped, tag = 'scoped memory for tpu_custom_call.1']
    #allocation7 [shape = 'u8[32768]{0}', space=vmem, size = 0x8000, scoped, tag = 'output window, operand 1, single buffered']
    #allocation8 [shape = 's32[1]{0}', space=sflag, size = 0x4, scoped, tag = 'scoped memory for tpu_custom_call.1']
    %18 = vsyncpa [#allocation6], 0
    %s19 = scalar_lea.sflag [#allocation6], 1
    %20 = vsyncpa %s19, 0
    %21 = vsyncpa [#allocation8], 0
    loop: start=0, step=1, limit=4
    $region2: #{tpu_custom_call.1} parent=1 // loop_pre_header
      _
    $region3: #{tpu_custom_call.1} parent=1 // loop_header
      %s23 = sphi 0, %s27
      %p24 = scmp.ge.s32.totalorder %s23, 4
      %s33 = sphi 0, %s35
      %s36 = sphi 0, %s33
      %s37 = sphi 0, %s36
      %s53 = sphi 0, %s37
      %s59 = sphi 0, %s61
      %s62 = sphi 0, %s59
      %s63 = sphi 0, %s62
      %s79 = sphi 0, %s63
      %s85 = sphi 0, %s87
      %s88 = sphi 0, %s85
      %s89 = sphi 0, %s88
      %s105 = sphi 0, %s89
      %s111 = sphi 0, %s113
      %s114 = sphi 0, %s111
      %s115 = sphi 0, %s114
      %s131 = sphi 0, %s115
      %s135 = sphi 0, %s135
      %s137 = sphi 0, %s135
      %s138 = sphi 0, %s137
      %s152 = sphi 0, %s138
      %s156 = sphi 0, %s156
      %s158 = sphi 0, %s156
      %s159 = sphi 0, %s158
      %s173 = sphi 0, %s159
      %s177 = sphi 0, %s177
      %s179 = sphi 0, %s177
      %s180 = sphi 0, %s179
      %s194 = sphi 0, %s180
      %s198 = sphi 0, %s198
      %s200 = sphi 0, %s198
      %s201 = sphi 0, %s200
      %s215 = sphi 0, %s201
      %s219 = sphi 0, %s219
      %s221 = sphi 0, %s219
      %s222 = sphi 0, %s221
      %s236 = sphi 0, %s222
      %s240 = sphi 0, %s240
      %s242 = sphi 0, %s240
      %s243 = sphi 0, %s242
      %s257 = sphi 0, %s243
      %s261 = sphi 0, %s261
      %s263 = sphi 0, %s261
      %s264 = sphi 0, %s263
      %s278 = sphi 0, %s264
      %s284 = sphi 0, %s286
      %s287 = sphi 0, %s284
      %s288 = sphi 0, %s287
      %s304 = sphi 0, %s288
      %s308 = sphi 0, %s308
      %s310 = sphi 0, %s308
      %s311 = sphi 0, %s310
      %s325 = sphi 0, %s311
    $region4: #{tpu_custom_call.1} parent=1 // loop_header_branch
      %26 = sbr.rel (%p24) target = $region8
    $region5: #{tpu_custom_call.1} parent=1 // loop_body
      %s28 = ssub.s32 %s23, 1
      %s29 = ssub.s32 %s23, 2
      %s30 = sadd.s32 %s23, 1
      %s31 = ssub.s32 %s23, %s30
      %p32 = scmp.eq.s32.totalorder %s31, 0
      %s34 = sadd.s32 %s33, 1
      %s35 = scalar_select %p32, %s33, %s34
      %p38 = pneg %p32
      %p39 = scmp.eq.s32.totalorder %s23, 1
      %p40 = por %p38, %p39
      %p41 = scmp.ne.s32.totalorder %s33, %s36
      %p42 = scmp.eq.s32.totalorder %s23, 0
      %p43 = por %p41, %p42
      %p44 = scmp.ne.s32.totalorder %s33, %s36
      %p45 = scmp.eq.s32.totalorder %s28, 1
      %p46 = por %p44, %p45
      %p47 = scmp.ne.s32.totalorder %s36, %s37
      %p48 = scmp.eq.s32.totalorder %s28, 0
      %p49 = por %p47, %p48
      %p50 = scmp.ne.s32.totalorder %s36, %s37
      %p51 = scmp.eq.s32.totalorder %s29, 1
      %p52 = por %p50, %p51
      %p54 = scmp.ne.s32.totalorder %s37, %s53
      %p55 = scmp.eq.s32.totalorder %s29, 0
      %p56 = por %p54, %p55
      %s57 = ssub.s32 %s23, %s30
      %p58 = scmp.eq.s32.totalorder %s57, 0
      %s60 = sadd.s32 %s59, 1
      %s61 = scalar_select %p58, %s59, %s60
      %p64 = pneg %p58
      %p65 = scmp.eq.s32.totalorder %s23, 1
      %p66 = por %p64, %p65
      %p67 = scmp.ne.s32.totalorder %s59, %s62
      %p68 = scmp.eq.s32.totalorder %s23, 0
      %p69 = por %p67, %p68
      %p70 = scmp.ne.s32.totalorder %s59, %s62
      %p71 = scmp.eq.s32.totalorder %s28, 1
      %p72 = por %p70, %p71
      %p73 = scmp.ne.s32.totalorder %s62, %s63
      %p74 = scmp.eq.s32.totalorder %s28, 0
      %p75 = por %p73, %p74
      %p76 = scmp.ne.s32.totalorder %s62, %s63
      %p77 = scmp.eq.s32.totalorder %s29, 1
      %p78 = por %p76, %p77
      %p80 = scmp.ne.s32.totalorder %s63, %s79
      %p81 = scmp.eq.s32.totalorder %s29, 0
      %p82 = por %p80, %p81
      %s83 = ssub.s32 %s23, %s30
      %p84 = scmp.eq.s32.totalorder %s83, 0
      %s86 = sadd.s32 %s85, 1
      %s87 = scalar_select %p84, %s85, %s86
      %p90 = pneg %p84
      %p91 = scmp.eq.s32.totalorder %s23, 1
      %p92 = por %p90, %p91
      %p93 = scmp.ne.s32.totalorder %s85, %s88
      %p94 = scmp.eq.s32.totalorder %s23, 0
      %p95 = por %p93, %p94
      %p96 = scmp.ne.s32.totalorder %s85, %s88
      %p97 = scmp.eq.s32.totalorder %s28, 1
      %p98 = por %p96, %p97
      %p99 = scmp.ne.s32.totalorder %s88, %s89
      %p100 = scmp.eq.s32.totalorder %s28, 0
      %p101 = por %p99, %p100
      %p102 = scmp.ne.s32.totalorder %s88, %s89
      %p103 = scmp.eq.s32.totalorder %s29, 1
      %p104 = por %p102, %p103
      %p106 = scmp.ne.s32.totalorder %s89, %s105
      %p107 = scmp.eq.s32.totalorder %s29, 0
      %p108 = por %p106, %p107
      %s109 = ssub.s32 %s23, %s30
      %p110 = scmp.eq.s32.totalorder %s109, 0
      %s112 = sadd.s32 %s111, 1
      %s113 = scalar_select %p110, %s111, %s112
      %p116 = pneg %p110
      %p117 = scmp.eq.s32.totalorder %s23, 1
      %p118 = por %p116, %p117
      %p119 = scmp.ne.s32.totalorder %s111, %s114
      %p120 = scmp.eq.s32.totalorder %s23, 0
      %p121 = por %p119, %p120
      %p122 = scmp.ne.s32.totalorder %s111, %s114
      %p123 = scmp.eq.s32.totalorder %s28, 1
      %p124 = por %p122, %p123
      %p125 = scmp.ne.s32.totalorder %s114, %s115
      %p126 = scmp.eq.s32.totalorder %s28, 0
      %p127 = por %p125, %p126
      %p128 = scmp.ne.s32.totalorder %s114, %s115
      %p129 = scmp.eq.s32.totalorder %s29, 1
      %p130 = por %p128, %p129
      %p132 = scmp.ne.s32.totalorder %s115, %s131
      %p133 = scmp.eq.s32.totalorder %s29, 0
      %p134 = por %p132, %p133
      %s136 = sadd.s32 %s135, 1
      %p139 = scmp.eq.s32.totalorder %s23, 1
      %p140 = scmp.ne.s32.totalorder %s135, %s137
      %p141 = scmp.eq.s32.totalorder %s23, 0
      %p142 = por %p140, %p141
      %p143 = scmp.ne.s32.totalorder %s135, %s137
      %p144 = scmp.eq.s32.totalorder %s28, 1
      %p145 = por %p143, %p144
      %p146 = scmp.ne.s32.totalorder %s137, %s138
      %p147 = scmp.eq.s32.totalorder %s28, 0
      %p148 = por %p146, %p147
      %p149 = scmp.ne.s32.totalorder %s137, %s138
      %p150 = scmp.eq.s32.totalorder %s29, 1
      %p151 = por %p149, %p150
      %p153 = scmp.ne.s32.totalorder %s138, %s152
      %p154 = scmp.eq.s32.totalorder %s29, 0
      %p155 = por %p153, %p154
      %s157 = sadd.s32 %s156, 1
      %p160 = scmp.eq.s32.totalorder %s23, 1
      %p161 = scmp.ne.s32.totalorder %s156, %s158
      %p162 = scmp.eq.s32.totalorder %s23, 0
      %p163 = por %p161, %p162
      %p164 = scmp.ne.s32.totalorder %s156, %s158
      %p165 = scmp.eq.s32.totalorder %s28, 1
      %p166 = por %p164, %p165
      %p167 = scmp.ne.s32.totalorder %s158, %s159
      %p168 = scmp.eq.s32.totalorder %s28, 0
      %p169 = por %p167, %p168
      %p170 = scmp.ne.s32.totalorder %s158, %s159
      %p171 = scmp.eq.s32.totalorder %s29, 1
      %p172 = por %p170, %p171
      %p174 = scmp.ne.s32.totalorder %s159, %s173
      %p175 = scmp.eq.s32.totalorder %s29, 0
      %p176 = por %p174, %p175
      %s178 = sadd.s32 %s177, 1
      %p181 = scmp.eq.s32.totalorder %s23, 1
      %p182 = scmp.ne.s32.totalorder %s177, %s179
      %p183 = scmp.eq.s32.totalorder %s23, 0
      %p184 = por %p182, %p183
      %p185 = scmp.ne.s32.totalorder %s177, %s179
      %p186 = scmp.eq.s32.totalorder %s28, 1
      %p187 = por %p185, %p186
      %p188 = scmp.ne.s32.totalorder %s179, %s180
      %p189 = scmp.eq.s32.totalorder %s28, 0
      %p190 = por %p188, %p189
      %p191 = scmp.ne.s32.totalorder %s179, %s180
      %p192 = scmp.eq.s32.totalorder %s29, 1
      %p193 = por %p191, %p192
      %p195 = scmp.ne.s32.totalorder %s180, %s194
      %p196 = scmp.eq.s32.totalorder %s29, 0
      %p197 = por %p195, %p196
      %s199 = sadd.s32 %s198, 1
      %p202 = scmp.eq.s32.totalorder %s23, 1
      %p203 = scmp.ne.s32.totalorder %s198, %s200
      %p204 = scmp.eq.s32.totalorder %s23, 0
      %p205 = por %p203, %p204
      %p206 = scmp.ne.s32.totalorder %s198, %s200
      %p207 = scmp.eq.s32.totalorder %s28, 1
      %p208 = por %p206, %p207
      %p209 = scmp.ne.s32.totalorder %s200, %s201
      %p210 = scmp.eq.s32.totalorder %s28, 0
      %p211 = por %p209, %p210
      %p212 = scmp.ne.s32.totalorder %s200, %s201
      %p213 = scmp.eq.s32.totalorder %s29, 1
      %p214 = por %p212, %p213
      %p216 = scmp.ne.s32.totalorder %s201, %s215
      %p217 = scmp.eq.s32.totalorder %s29, 0
      %p218 = por %p216, %p217
      %s220 = sadd.s32 %s219, 1
      %p223 = scmp.eq.s32.totalorder %s23, 1
      %p224 = scmp.ne.s32.totalorder %s219, %s221
      %p225 = scmp.eq.s32.totalorder %s23, 0
      %p226 = por %p224, %p225
      %p227 = scmp.ne.s32.totalorder %s219, %s221
      %p228 = scmp.eq.s32.totalorder %s28, 1
      %p229 = por %p227, %p228
      %p230 = scmp.ne.s32.totalorder %s221, %s222
      %p231 = scmp.eq.s32.totalorder %s28, 0
      %p232 = por %p230, %p231
      %p233 = scmp.ne.s32.totalorder %s221, %s222
      %p234 = scmp.eq.s32.totalorder %s29, 1
      %p235 = por %p233, %p234
      %p237 = scmp.ne.s32.totalorder %s222, %s236
      %p238 = scmp.eq.s32.totalorder %s29, 0
      %p239 = por %p237, %p238
      %s241 = sadd.s32 %s240, 1
      %p244 = scmp.eq.s32.totalorder %s23, 1
      %p245 = scmp.ne.s32.totalorder %s240, %s242
      %p246 = scmp.eq.s32.totalorder %s23, 0
      %p247 = por %p245, %p246
      %p248 = scmp.ne.s32.totalorder %s240, %s242
      %p249 = scmp.eq.s32.totalorder %s28, 1
      %p250 = por %p248, %p249
      %p251 = scmp.ne.s32.totalorder %s242, %s243
      %p252 = scmp.eq.s32.totalorder %s28, 0
      %p253 = por %p251, %p252
      %p254 = scmp.ne.s32.totalorder %s242, %s243
      %p255 = scmp.eq.s32.totalorder %s29, 1
      %p256 = por %p254, %p255
      %p258 = scmp.ne.s32.totalorder %s243, %s257
      %p259 = scmp.eq.s32.totalorder %s29, 0
      %p260 = por %p258, %p259
      %s262 = sadd.s32 %s261, 1
      %p265 = scmp.eq.s32.totalorder %s23, 1
      %p266 = scmp.ne.s32.totalorder %s261, %s263
      %p267 = scmp.eq.s32.totalorder %s23, 0
      %p268 = por %p266, %p267
      %p269 = scmp.ne.s32.totalorder %s261, %s263
      %p270 = scmp.eq.s32.totalorder %s28, 1
      %p271 = por %p269, %p270
      %p272 = scmp.ne.s32.totalorder %s263, %s264
      %p273 = scmp.eq.s32.totalorder %s28, 0
      %p274 = por %p272, %p273
      %p275 = scmp.ne.s32.totalorder %s263, %s264
      %p276 = scmp.eq.s32.totalorder %s29, 1
      %p277 = por %p275, %p276
      %p279 = scmp.ne.s32.totalorder %s264, %s278
      %p280 = scmp.eq.s32.totalorder %s29, 0
      %p281 = por %p279, %p280
      %s282 = ssub.s32 %s23, %s30
      %p283 = scmp.eq.s32.totalorder %s282, 0
      %s285 = sadd.s32 %s284, 1
      %s286 = scalar_select %p283, %s284, %s285
      %p289 = pneg %p283
      %p290 = scmp.eq.s32.totalorder %s23, 1
      %p291 = por %p289, %p290
      %p292 = scmp.ne.s32.totalorder %s284, %s287
      %p293 = scmp.eq.s32.totalorder %s23, 0
      %p294 = por %p292, %p293
      %p295 = scmp.ne.s32.totalorder %s284, %s287
      %p296 = scmp.eq.s32.totalorder %s28, 1
      %p297 = por %p295, %p296
      %p298 = scmp.ne.s32.totalorder %s287, %s288
      %p299 = scmp.eq.s32.totalorder %s28, 0
      %p300 = por %p298, %p299
      %p301 = scmp.ne.s32.totalorder %s287, %s288
      %p302 = scmp.eq.s32.totalorder %s29, 1
      %p303 = por %p301, %p302
      %p305 = scmp.ne.s32.totalorder %s288, %s304
      %p306 = scmp.eq.s32.totalorder %s29, 0
      %p307 = por %p305, %p306
      %s309 = sadd.s32 %s308, 1
      %p312 = scmp.eq.s32.totalorder %s23, 1
      %p313 = scmp.ne.s32.totalorder %s308, %s310
      %p314 = scmp.eq.s32.totalorder %s23, 0
      %p315 = por %p313, %p314
      %p316 = scmp.ne.s32.totalorder %s308, %s310
      %p317 = scmp.eq.s32.totalorder %s28, 1
      %p318 = por %p316, %p317
      %p319 = scmp.ne.s32.totalorder %s310, %s311
      %p320 = scmp.eq.s32.totalorder %s28, 0
      %p321 = por %p319, %p320
      %p322 = scmp.ne.s32.totalorder %s310, %s311
      %p323 = scmp.eq.s32.totalorder %s29, 1
      %p324 = por %p322, %p323
      %p326 = scmp.ne.s32.totalorder %s311, %s325
      %p327 = scmp.eq.s32.totalorder %s29, 0
      %p328 = por %p326, %p327
      %p329 = scmp.le.s32.totalorder 1, %s23
      %p330 = scmp.lt.s32.totalorder %s23, 3
      %p331 = pnand %p329, %p330
      %p332 = pneg %p331
      // Predicated region
      $region9: #{tpu_custom_call.1} parent=5 // pred_check
        _
      $region10: #{tpu_custom_call.1} parent=5 // pred_check_branch
        %334 = sbr.rel (%p331) target = $region12
      $region11: #{tpu_custom_call.1} parent=5 // pred_region
        %s335 = ssub.s32 %s23, 1
        // Predicated region
        $region13: #{tpu_custom_call.1} parent=11 // pred_check
          %p336 = pneg %p148
        $region14: #{tpu_custom_call.1} parent=11 // pred_check_branch
          %338 = sbr.rel (%p336) target = $region16
        $region15: #{tpu_custom_call.1} parent=11 // pred_region
          _
        $region16: #{tpu_custom_call.1} parent=11 // pred_fallthru
          _
        // Predicated region
        $region17: #{tpu_custom_call.1} parent=11 // pred_check
          %p339 = pneg %p169
        $region18: #{tpu_custom_call.1} parent=11 // pred_check_branch
          %341 = sbr.rel (%p339) target = $region20
        $region19: #{tpu_custom_call.1} parent=11 // pred_region
          _
        $region20: #{tpu_custom_call.1} parent=11 // pred_fallthru
          _
        // Predicated region
        $region21: #{tpu_custom_call.1} parent=11 // pred_check
          %p342 = pneg %p190
        $region22: #{tpu_custom_call.1} parent=11 // pred_check_branch
          %344 = sbr.rel (%p342) target = $region24
        $region23: #{tpu_custom_call.1} parent=11 // pred_region
          _
        $region24: #{tpu_custom_call.1} parent=11 // pred_fallthru
          _
        // Predicated region
        $region25: #{tpu_custom_call.1} parent=11 // pred_check
          %p345 = pneg %p211
        $region26: #{tpu_custom_call.1} parent=11 // pred_check_branch
          %347 = sbr.rel (%p345) target = $region28
        $region27: #{tpu_custom_call.1} parent=11 // pred_region
          _
        $region28: #{tpu_custom_call.1} parent=11 // pred_fallthru
          _
        // Predicated region
        $region29: #{tpu_custom_call.1} parent=11 // pred_check
          %p348 = pneg %p232
        $region30: #{tpu_custom_call.1} parent=11 // pred_check_branch
          %350 = sbr.rel (%p348) target = $region32
        $region31: #{tpu_custom_call.1} parent=11 // pred_region
          _
        $region32: #{tpu_custom_call.1} parent=11 // pred_fallthru
          _
        // Predicated region
        $region33: #{tpu_custom_call.1} parent=11 // pred_check
          %p351 = pneg %p253
        $region34: #{tpu_custom_call.1} parent=11 // pred_check_branch
          %353 = sbr.rel (%p351) target = $region36
        $region35: #{tpu_custom_call.1} parent=11 // pred_region
          _
        $region36: #{tpu_custom_call.1} parent=11 // pred_fallthru
          _
        // Predicated region
        $region37: #{tpu_custom_call.1} parent=11 // pred_check
          %p354 = pneg %p274
        $region38: #{tpu_custom_call.1} parent=11 // pred_check_branch
          %356 = sbr.rel (%p354) target = $region40
        $region39: #{tpu_custom_call.1} parent=11 // pred_region
          _
        $region40: #{tpu_custom_call.1} parent=11 // pred_fallthru
          _
      $region12: #{tpu_custom_call.1} parent=5 // pred_fallthru
        _
      %p357 = scmp.lt.s32.totalorder %s23, 2
      // Predicated region
      $region41: #{tpu_custom_call.1} parent=5 // pred_check
        %p358 = pneg %p357
      $region42: #{tpu_custom_call.1} parent=5 // pred_check_branch
        %360 = sbr.rel (%p358) target = $region44
      $region43: #{tpu_custom_call.1} parent=5 // pred_region
        // Predicated region
        $region45: #{tpu_custom_call.1} parent=43 // pred_check
          %p361 = pneg %p43
        $region46: #{tpu_custom_call.1} parent=43 // pred_check_branch
          %363 = sbr.rel (%p361) target = $region48
        $region47: #{tpu_custom_call.1} parent=43 // pred_region
          %s364 = smul.u32 16, %s23
          %p365 = scmp.lt.s32.totalorder %s364, 31
          %s366 = scalar_select %p365, %s364, 31
          %s367 = smul.addr %s366, 8
          %s368 = scalar_lea.vmem %s0, %s367
          %s369 = smul.u32 16, %s23
        $region48: #{tpu_custom_call.1} parent=43 // pred_fallthru
          _
        // Predicated region
        $region49: #{tpu_custom_call.1} parent=43 // pred_check
          %p370 = pneg %p69
        $region50: #{tpu_custom_call.1} parent=43 // pred_check_branch
          %372 = sbr.rel (%p370) target = $region52
        $region51: #{tpu_custom_call.1} parent=43 // pred_region
          %s373 = smul.u32 16, %s23
          %p374 = scmp.lt.s32.totalorder %s373, 31
          %s375 = scalar_select %p374, %s373, 31
          %s376 = smul.addr %s375, 8
          %s377 = scalar_lea.vmem %s1, %s376
          %s378 = smul.u32 16, %s23
        $region52: #{tpu_custom_call.1} parent=43 // pred_fallthru
          _
        // Predicated region
        $region53: #{tpu_custom_call.1} parent=43 // pred_check
          %p379 = pneg %p95
        $region54: #{tpu_custom_call.1} parent=43 // pred_check_branch
          %381 = sbr.rel (%p379) target = $region56
        $region55: #{tpu_custom_call.1} parent=43 // pred_region
          %s382 = smul.u32 16, %s23
          %p383 = scmp.lt.s32.totalorder %s382, 31
          %s384 = scalar_select %p383, %s382, 31
          %s385 = smul.addr %s384, 8
          %s386 = scalar_lea.vmem %s2, %s385
          %s387 = smul.u32 16, %s23
        $region56: #{tpu_custom_call.1} parent=43 // pred_fallthru
          _
        // Predicated region
        $region57: #{tpu_custom_call.1} parent=43 // pred_check
          %p388 = pneg %p121
        $region58: #{tpu_custom_call.1} parent=43 // pred_check_branch
          %390 = sbr.rel (%p388) target = $region60
        $region59: #{tpu_custom_call.1} parent=43 // pred_region
          %p391 = scmp.lt.s32.totalorder %s23, 1
          %s392 = scalar_select %p391, %s23, 1
          %s393 = scalar_lea.vmem %s3, %s392
        $region60: #{tpu_custom_call.1} parent=43 // pred_fallthru
          _
      $region44: #{tpu_custom_call.1} parent=5 // pred_fallthru
        _
      %p394 = scmp.le.s32.totalorder 1, %s23
      %p395 = scmp.lt.s32.totalorder %s23, 3
      %p396 = pnand %p394, %p395
      %p397 = pneg %p396
      // Predicated region
      $region61: #{tpu_custom_call.1} parent=5 // pred_check
        _
      $region62: #{tpu_custom_call.1} parent=5 // pred_check_branch
        %399 = sbr.rel (%p396) target = $region64
      $region63: #{tpu_custom_call.1} parent=5 // pred_region
        %s400 = ssub.s32 %s23, 1
        %s401 = smul.u32 16, %s28
        %p402 = scmp.lt.s32.totalorder %s401, 31
        %s403 = scalar_select %p402, %s401, 31
        %s404 = smul.addr %s403, 8
        %s405 = scalar_lea.vmem %s0, %s404
        %p406 = pneg %p49
        %p407 = pneg %p46
        %s408 = smul.u32 16, %s28
        %p409 = scmp.lt.s32.totalorder %s408, 31
        %s410 = scalar_select %p409, %s408, 31
        %s411 = smul.addr %s410, 8
        %s412 = scalar_lea.vmem %s1, %s411
        %p413 = pneg %p75
        %p414 = pneg %p72
        %s415 = smul.u32 16, %s28
        %p416 = scmp.lt.s32.totalorder %s415, 31
        %s417 = scalar_select %p416, %s415, 31
        %s418 = smul.addr %s417, 8
        %s419 = scalar_lea.vmem %s2, %s418
        %p420 = pneg %p101
        %p421 = pneg %p98
        %p422 = scmp.lt.s32.totalorder %s28, 1
        %s423 = scalar_select %p422, %s28, 1
        %s424 = scalar_lea.vmem %s3, %s423
        %p425 = pneg %p127
        %p426 = pneg %p124
        %p427 = pneg %p148
        %p428 = pneg %p145
        %p429 = pneg %p169
        %p430 = pneg %p166
        %p431 = pneg %p190
        %p432 = pneg %p187
        %p433 = pneg %p211
        %p434 = pneg %p208
        %p435 = pneg %p232
        %p436 = pneg %p229
        %p437 = pneg %p253
        %p438 = pneg %p250
        %p439 = pneg %p274
        %p440 = pneg %p271
        %p441 = pneg %p300
        %p442 = pneg %p297
        %s443 = sand.u32 %s287, 1
        %s444 = scalar_lea.sflag [#allocation6], %s443
        %s445 = sand.u32 %s287, 1
        %s446 = smul.addr %s445, 128
        %s447 = scalar_lea.vmem [#allocation5], %s446
        %p448 = pneg %p321
        %p449 = pneg %p318
        %s450 = smul.u32 16, %s28
        %p451 = scmp.lt.s32.totalorder %s450, 31
        %s452 = scalar_select %p451, %s450, 31
        %s453 = smul.addr %s452, 8
        %s454 = scalar_lea.vmem %s0, %s453
        %s455 = smul.u32 16, %s28
        %s456 = smul.u32 16, %s28
        %p457 = scmp.lt.s32.totalorder %s456, 31
        %s458 = scalar_select %p457, %s456, 31
        %s459 = smul.addr %s458, 8
        %s460 = scalar_lea.vmem %s1, %s459
        %s461 = smul.u32 16, %s28
        %s462 = smul.u32 16, %s28
        %p463 = scmp.lt.s32.totalorder %s462, 31
        %s464 = scalar_select %p463, %s462, 31
        %s465 = smul.addr %s464, 8
        %s466 = scalar_lea.vmem %s2, %s465
        %s467 = smul.u32 16, %s28
        %p468 = scmp.lt.s32.totalorder %s28, 1
        %s469 = scalar_select %p468, %s28, 1
        %s470 = scalar_lea.vmem %s3, %s469
        %s471 = smul.u32 16, %s28
        %p472 = scmp.eq.s32.totalorder %s28, 0
        // Predicated region
        $region65: #{tpu_custom_call.1} parent=63 // pred_check
          %p473 = pneg %p472
        $region66: #{tpu_custom_call.1} parent=63 // pred_check_branch
          %475 = sbr.rel (%p473) target = $region68
        $region67: #{tpu_custom_call.1} parent=63 // pred_region
          %v476 = vld [vmem:[%s4] sm:$0xff]
          %v477 = vld [vmem:[%s4 + $0x8] sm:$0xff]
          %v478 = vld [vmem:[%s4 + $0x10] sm:$0xff]
          %v479 = vld [vmem:[%s4 + $0x18] sm:$0xff]
          %v480 = vld [vmem:[%s4 + $0x20] sm:$0xff]
          %v481 = vld [vmem:[%s4 + $0x28] sm:$0xff]
          %v482 = vld [vmem:[%s4 + $0x30] sm:$0xff]
          %v483 = vld [vmem:[%s4 + $0x38] sm:$0xff]
          %v484 = vld [vmem:[%s5] sm:$0xff]
          %v485 = vld [vmem:[%s5 + $0x8] sm:$0xff]
          %v486 = vld [vmem:[%s5 + $0x10] sm:$0xff]
          %v487 = vld [vmem:[%s5 + $0x18] sm:$0xff]
          %v488 = vld [vmem:[%s5 + $0x20] sm:$0xff]
          %v489 = vld [vmem:[%s5 + $0x28] sm:$0xff]
          %v490 = vld [vmem:[%s5 + $0x30] sm:$0xff]
          %v491 = vld [vmem:[%s5 + $0x38] sm:$0xff]
          %v492 = vld [vmem:[%s5 + $0x40] sm:$0xff]
          %v493 = vld [vmem:[%s5 + $0x48] sm:$0xff]
          %v494 = vld [vmem:[%s5 + $0x50] sm:$0xff]
          %v495 = vld [vmem:[%s5 + $0x58] sm:$0xff]
          %v496 = vld [vmem:[%s6] sm:$0x7]
          %v498 = vlaneseq
          %v499 = vshrl.u32 %v498, 7
          %v500 = vsub.s32 0, %v499
          %v501 = vrot.slane %v496, %v500
          %v502 = vlaneseq
          %v503 = vshrl.u32 %v502, 7
          %v504 = vsub.s32 1, %v503
          %v505 = vrot.slane %v496, %v504
          %v506 = vlaneseq
          %v507 = vshrl.u32 %v506, 7
          %v508 = vsub.s32 2, %v507
          %v509 = vrot.slane %v496, %v508
          %vm513 = vcmask 261120
          %v515 = vsel %vm513, %v476, 0
          %v518 = vsel %vm513, %v477, 0
          %v521 = vsel %vm513, %v478, 0
          %v524 = vsel %vm513, %v479, 0
          %v527 = vsel %vm513, %v480, 0
          %v530 = vsel %vm513, %v481, 0
          %v533 = vsel %vm513, %v482, 0
          %v536 = vsel %vm513, %v483, 0
          %538 = vmatprep.subr.mxu0 0.0
          %539 = vmatpush1.msra.mxu0 0.0
          %540 = vmatprep.subr.mxu0 0.0
          %541 = vmatpush1.msra.mxu0 0.0
          %542 = vmatprep.subr.mxu0 0.0
          %543 = vmatpush1.msra.mxu0 0.0
          %544 = vmatprep.subr.mxu0 0.0
          %545 = vmatpush1.msra.mxu0 0.0
          %546 = vmatprep.subr.mxu0 0.0
          %547 = vmatpush1.msra.mxu0 0.0
          %548 = vmatprep.subr.mxu0 0.0
          %549 = vmatpush1.msra.mxu0 0.0
          %550 = vmatprep.subr.mxu0 0.0
          %551 = vmatpush1.msra.mxu0 0.0
          %552 = vmatprep.subr.mxu0 0.0
          %553 = vmatpush1.msra.mxu0 0.0
          %554 = vmatprep.subr.mxu0 0.0
          %555 = vmatpush1.msra.mxu0 0.0
          %556 = vmatprep.subr.mxu0 0.0
          %557 = vmatpush1.msra.mxu0 0.0
          %558 = vmatprep.subr.mxu0 0.0
          %559 = vmatpush1.msra.mxu0 0.0
          %560 = vmatprep.subr.mxu0 0.0
          %561 = vmatpush1.msra.mxu0 0.0
          %562 = vmatprep.subr.mxu0 %v494
          %563 = vmatpush1.msra.mxu0 %v493
          %564 = vmatprep.subr.mxu0 %v491
          %565 = vmatpush1.msra.mxu0 %v490
          %566 = vmatprep.subr.mxu0 %v488
          %567 = vmatpush1.msra.mxu0 %v487
          %568 = vmatprep.subr.mxu0 %v485
          %569 = vmatpush1.msra.mxu0 %v484
          %570 = vmatprep.subr.mxu0 0.0
          %571 = vmatpush2.msra.mxu0 0.0
          %572 = vmatprep.subr.mxu0 0.0
          %573 = vmatpush2.msra.mxu0 0.0
          %574 = vmatprep.subr.mxu0 0.0
          %575 = vmatpush2.msra.mxu0 0.0
          %576 = vmatprep.subr.mxu0 0.0
          %577 = vmatpush2.msra.mxu0 0.0
          %578 = vmatprep.subr.mxu0 0.0
          %579 = vmatpush2.msra.mxu0 0.0
          %580 = vmatprep.subr.mxu0 0.0
          %581 = vmatpush2.msra.mxu0 0.0
          %582 = vmatprep.subr.mxu0 0.0
          %583 = vmatpush2.msra.mxu0 0.0
          %584 = vmatprep.subr.mxu0 0.0
          %585 = vmatpush2.msra.mxu0 0.0
          %586 = vmatprep.subr.mxu0 0.0
          %587 = vmatpush2.msra.mxu0 0.0
          %588 = vmatprep.subr.mxu0 0.0
          %589 = vmatpush2.msra.mxu0 0.0
          %590 = vmatprep.subr.mxu0 0.0
          %591 = vmatpush2.msra.mxu0 0.0
          %592 = vmatprep.subr.mxu0 0.0
          %593 = vmatpush2.msra.mxu0 0.0
          %594 = vmatprep.subr.mxu0 0.0
          %595 = vmatpush2.msra.mxu0 0.0
          %596 = vmatprep.subr.mxu0 0.0
          %597 = vmatpush2.msra.mxu0 0.0
          %598 = vmatprep.subr.mxu0 0.0
          %599 = vmatpush2.msra.mxu0 0.0
          %600 = vmatprep.subr.mxu0 0.0
          %601 = vmatpush2.msra.mxu0 0.0
          %602 = vmatprep.mubr.f32.mxu0 0.0
          %603 = vmatmul.mubr.f32.gmra.mxu0 %v515
          %v604 = vpop.f32.mrf.mxu0
          %v605 = vadd.f32 %v501, %v604
          %v606 = vpop.f32.mrf.mxu0
          %v607 = vadd.f32 %v505, %v606
          %608 = vmatprep.mubr.f32.mxu0 0.0
          %609 = vmatmul.mubr.f32.gmra.mxu0 %v518
          %v610 = vpop.f32.mrf.mxu0
          %v611 = vadd.f32 %v501, %v610
          %v612 = vpop.f32.mrf.mxu0
          %v613 = vadd.f32 %v505, %v612
          %614 = vmatprep.mubr.f32.mxu0 0.0
          %615 = vmatmul.mubr.f32.gmra.mxu0 %v521
          %v616 = vpop.f32.mrf.mxu0
          %v617 = vadd.f32 %v501, %v616
          %v618 = vpop.f32.mrf.mxu0
          %v619 = vadd.f32 %v505, %v618
          %620 = vmatprep.mubr.f32.mxu0 0.0
          %621 = vmatmul.mubr.f32.gmra.mxu0 %v524
          %v622 = vpop.f32.mrf.mxu0
          %v623 = vadd.f32 %v501, %v622
          %v624 = vpop.f32.mrf.mxu0
          %v625 = vadd.f32 %v505, %v624
          %626 = vmatprep.mubr.f32.mxu0 0.0
          %627 = vmatmul.mubr.f32.gmra.mxu0 %v527
          %v628 = vpop.f32.mrf.mxu0
          %v629 = vadd.f32 %v501, %v628
          %v630 = vpop.f32.mrf.mxu0
          %v631 = vadd.f32 %v505, %v630
          %632 = vmatprep.mubr.f32.mxu0 0.0
          %633 = vmatmul.mubr.f32.gmra.mxu0 %v530
          %v634 = vpop.f32.mrf.mxu0
          %v635 = vadd.f32 %v501, %v634
          %v636 = vpop.f32.mrf.mxu0
          %v637 = vadd.f32 %v505, %v636
          %638 = vmatprep.mubr.f32.mxu0 0.0
          %639 = vmatmul.mubr.f32.gmra.mxu0 %v533
          %v640 = vpop.f32.mrf.mxu0
          %v641 = vadd.f32 %v501, %v640
          %v642 = vpop.f32.mrf.mxu0
          %v643 = vadd.f32 %v505, %v642
          %644 = vmatprep.mubr.f32.mxu0 0.0
          %645 = vmatmul.mubr.f32.gmra.mxu0 %v536
          %v646 = vpop.f32.mrf.mxu0
          %v647 = vadd.f32 %v501, %v646
          %v648 = vpop.f32.mrf.mxu0
          %v649 = vadd.f32 %v505, %v648
          %650 = vdwg.mxu0
          %651 = vmatprep.subr.mxu0 0.0
          %652 = vmatpush1.msra.mxu0 0.0
          %653 = vmatprep.subr.mxu0 0.0
          %654 = vmatpush1.msra.mxu0 0.0
          %655 = vmatprep.subr.mxu0 0.0
          %656 = vmatpush1.msra.mxu0 0.0
          %657 = vmatprep.subr.mxu0 0.0
          %658 = vmatpush1.msra.mxu0 0.0
          %659 = vmatprep.subr.mxu0 0.0
          %660 = vmatpush1.msra.mxu0 0.0
          %661 = vmatprep.subr.mxu0 0.0
          %662 = vmatpush1.msra.mxu0 0.0
          %663 = vmatprep.subr.mxu0 0.0
          %664 = vmatpush1.msra.mxu0 0.0
          %665 = vmatprep.subr.mxu0 0.0
          %666 = vmatpush1.msra.mxu0 0.0
          %667 = vmatprep.subr.mxu0 0.0
          %668 = vmatpush1.msra.mxu0 0.0
          %669 = vmatprep.subr.mxu0 0.0
          %670 = vmatpush1.msra.mxu0 0.0
          %671 = vmatprep.subr.mxu0 0.0
          %672 = vmatpush1.msra.mxu0 0.0
          %673 = vmatprep.subr.mxu0 0.0
          %674 = vmatpush1.msra.mxu0 0.0
          %675 = vmatprep.subr.mxu0 0.0
          %676 = vmatpush1.msra.mxu0 %v495
          %677 = vmatprep.subr.mxu0 0.0
          %678 = vmatpush1.msra.mxu0 %v492
          %679 = vmatprep.subr.mxu0 0.0
          %680 = vmatpush1.msra.mxu0 %v489
          %681 = vmatprep.subr.mxu0 0.0
          %682 = vmatpush1.msra.mxu0 %v486
          %683 = vmatprep.subr.mxu0 0.0
          %684 = vmatpush2.msra.mxu0 0.0
          %685 = vmatprep.subr.mxu0 0.0
          %686 = vmatpush2.msra.mxu0 0.0
          %687 = vmatprep.subr.mxu0 0.0
          %688 = vmatpush2.msra.mxu0 0.0
          %689 = vmatprep.subr.mxu0 0.0
          %690 = vmatpush2.msra.mxu0 0.0
          %691 = vmatprep.subr.mxu0 0.0
          %692 = vmatpush2.msra.mxu0 0.0
          %693 = vmatprep.subr.mxu0 0.0
          %694 = vmatpush2.msra.mxu0 0.0
          %695 = vmatprep.subr.mxu0 0.0
          %696 = vmatpush2.msra.mxu0 0.0
          %697 = vmatprep.subr.mxu0 0.0
          %698 = vmatpush2.msra.mxu0 0.0
          %699 = vmatprep.subr.mxu0 0.0
          %700 = vmatpush2.msra.mxu0 0.0
          %701 = vmatprep.subr.mxu0 0.0
          %702 = vmatpush2.msra.mxu0 0.0
          %703 = vmatprep.subr.mxu0 0.0
          %704 = vmatpush2.msra.mxu0 0.0
          %705 = vmatprep.subr.mxu0 0.0
          %706 = vmatpush2.msra.mxu0 0.0
          %707 = vmatprep.subr.mxu0 0.0
          %708 = vmatpush2.msra.mxu0 0.0
          %709 = vmatprep.subr.mxu0 0.0
          %710 = vmatpush2.msra.mxu0 0.0
          %711 = vmatprep.subr.mxu0 0.0
          %712 = vmatpush2.msra.mxu0 0.0
          %713 = vmatprep.subr.mxu0 0.0
          %714 = vmatpush2.msra.mxu0 0.0
          %715 = vmatprep.mubr.f32.mxu0 0.0
          %716 = vmatmul.mubr.f32.gmra.mxu0 %v515
          %v717 = vpop.f32.mrf.mxu0
          %v718 = vadd.f32 %v509, %v717
          %v719 = vpop.f32.mrf.mxu0
          %720 = vmatprep.mubr.f32.mxu0 0.0
          %721 = vmatmul.mubr.f32.gmra.mxu0 %v518
          %v722 = vpop.f32.mrf.mxu0
          %v723 = vadd.f32 %v509, %v722
          %v724 = vpop.f32.mrf.mxu0
          %725 = vmatprep.mubr.f32.mxu0 0.0
          %726 = vmatmul.mubr.f32.gmra.mxu0 %v521
          %v727 = vpop.f32.mrf.mxu0
          %v728 = vadd.f32 %v509, %v727
          %v729 = vpop.f32.mrf.mxu0
          %730 = vmatprep.mubr.f32.mxu0 0.0
          %731 = vmatmul.mubr.f32.gmra.mxu0 %v524
          %v732 = vpop.f32.mrf.mxu0
          %v733 = vadd.f32 %v509, %v732
          %v734 = vpop.f32.mrf.mxu0
          %735 = vmatprep.mubr.f32.mxu0 0.0
          %736 = vmatmul.mubr.f32.gmra.mxu0 %v527
          %v737 = vpop.f32.mrf.mxu0
          %v738 = vadd.f32 %v509, %v737
          %v739 = vpop.f32.mrf.mxu0
          %740 = vmatprep.mubr.f32.mxu0 0.0
          %741 = vmatmul.mubr.f32.gmra.mxu0 %v530
          %v742 = vpop.f32.mrf.mxu0
          %v743 = vadd.f32 %v509, %v742
          %v744 = vpop.f32.mrf.mxu0
          %745 = vmatprep.mubr.f32.mxu0 0.0
          %746 = vmatmul.mubr.f32.gmra.mxu0 %v533
          %v747 = vpop.f32.mrf.mxu0
          %v748 = vadd.f32 %v509, %v747
          %v749 = vpop.f32.mrf.mxu0
          %750 = vmatprep.mubr.f32.mxu0 0.0
          %751 = vmatmul.mubr.f32.gmra.mxu0 %v536
          %v752 = vpop.f32.mrf.mxu0
          %v753 = vadd.f32 %v509, %v752
          %v754 = vpop.f32.mrf.mxu0
          %755 = vdwg.mxu0
          %756 = vst [vmem:[#allocation2] sm:$0xff] %v605
          %757 = vst [vmem:[#allocation2 + $0x8] sm:$0xff] %v607
          %758 = vst [vmem:[#allocation2 + $0x10] sm:$0xff] %v718
          %759 = vst [vmem:[#allocation2 + $0x18] sm:$0xff] %v611
          %760 = vst [vmem:[#allocation2 + $0x20] sm:$0xff] %v613
          %761 = vst [vmem:[#allocation2 + $0x28] sm:$0xff] %v723
          %762 = vst [vmem:[#allocation2 + $0x30] sm:$0xff] %v617
          %763 = vst [vmem:[#allocation2 + $0x38] sm:$0xff] %v619
          %764 = vst [vmem:[#allocation2 + $0x40] sm:$0xff] %v728
          %765 = vst [vmem:[#allocation2 + $0x48] sm:$0xff] %v623
          %766 = vst [vmem:[#allocation2 + $0x50] sm:$0xff] %v625
          %767 = vst [vmem:[#allocation2 + $0x58] sm:$0xff] %v733
          %768 = vst [vmem:[#allocation2 + $0x60] sm:$0xff] %v629
          %769 = vst [vmem:[#allocation2 + $0x68] sm:$0xff] %v631
          %770 = vst [vmem:[#allocation2 + $0x70] sm:$0xff] %v738
          %771 = vst [vmem:[#allocation2 + $0x78] sm:$0xff] %v635
          %772 = vst [vmem:[#allocation2 + $0x80] sm:$0xff] %v637
          %773 = vst [vmem:[#allocation2 + $0x88] sm:$0xff] %v743
          %774 = vst [vmem:[#allocation2 + $0x90] sm:$0xff] %v641
          %775 = vst [vmem:[#allocation2 + $0x98] sm:$0xff] %v643
          %776 = vst [vmem:[#allocation2 + $0xa0] sm:$0xff] %v748
          %777 = vst [vmem:[#allocation2 + $0xa8] sm:$0xff] %v647
          %778 = vst [vmem:[#allocation2 + $0xb0] sm:$0xff] %v649
          %779 = vst [vmem:[#allocation2 + $0xb8] sm:$0xff] %v753
          %780 = vst [vmem:[#allocation3] sm:$0xff] 0.0
          %781 = vst [vmem:[#allocation3 + $0x8] sm:$0xff] 0.0
          %782 = vst [vmem:[#allocation3 + $0x10] sm:$0xff] 0.0
          %783 = vst [vmem:[#allocation3 + $0x18] sm:$0xff] 0.0
          %784 = vst [vmem:[#allocation3 + $0x20] sm:$0xff] 0.0
          %785 = vst [vmem:[#allocation3 + $0x28] sm:$0xff] 0.0
          %786 = vst [vmem:[#allocation3 + $0x30] sm:$0xff] 0.0
          %787 = vst [vmem:[#allocation3 + $0x38] sm:$0xff] 0.0
          %vm788 = vcmask 31744
          %789 = vst.msk [vmem:[#allocation4] sm:$0xff] %vm788, 0.0
          %790 = vst.msk [vmem:[#allocation4 + $0x8] sm:$0xff] %vm788, 0.0
          %791 = vst.msk [vmem:[#allocation4 + $0x10] sm:$0xff] %vm788, 0.0
          %792 = vst.msk [vmem:[#allocation4 + $0x18] sm:$0xff] %vm788, 0.0
          %793 = vst.msk [vmem:[#allocation4 + $0x20] sm:$0xff] %vm788, 0.0
          %794 = vst.msk [vmem:[#allocation4 + $0x28] sm:$0xff] %vm788, 0.0
          %795 = vst.msk [vmem:[#allocation4 + $0x30] sm:$0xff] %vm788, 0.0
          %796 = vst.msk [vmem:[#allocation4 + $0x38] sm:$0xff] %vm788, 0.0
        $region68: #{tpu_custom_call.1} parent=63 // pred_fallthru
          _
        %v797 = vld [vmem:[%s460] sm:$0xff]
        %v798 = vld [vmem:[%s460 + $0x8] sm:$0xff]
        %v799 = vld [vmem:[%s460 + $0x10] sm:$0xff]
        %v800 = vld [vmem:[%s460 + $0x18] sm:$0xff]
        %v801 = vld [vmem:[%s460 + $0x20] sm:$0xff]
        %v802 = vld [vmem:[%s460 + $0x28] sm:$0xff]
        %v803 = vld [vmem:[%s460 + $0x30] sm:$0xff]
        %v804 = vld [vmem:[%s460 + $0x38] sm:$0xff]
        %v805 = vld [vmem:[%s460 + $0x40] sm:$0xff]
        %v806 = vld [vmem:[%s460 + $0x48] sm:$0xff]
        %v807 = vld [vmem:[%s460 + $0x50] sm:$0xff]
        %v808 = vld [vmem:[%s460 + $0x58] sm:$0xff]
        %v809 = vld [vmem:[%s460 + $0x60] sm:$0xff]
        %v810 = vld [vmem:[%s460 + $0x68] sm:$0xff]
        %v811 = vld [vmem:[%s460 + $0x70] sm:$0xff]
        %v812 = vld [vmem:[%s460 + $0x78] sm:$0xff]
        %v813 = vld [vmem:[%s466] sm:$0xff]
        %v814 = vld [vmem:[%s466 + $0x8] sm:$0xff]
        %v815 = vld [vmem:[%s466 + $0x10] sm:$0xff]
        %v816 = vld [vmem:[%s466 + $0x18] sm:$0xff]
        %v817 = vld [vmem:[%s466 + $0x20] sm:$0xff]
        %v818 = vld [vmem:[%s466 + $0x28] sm:$0xff]
        %v819 = vld [vmem:[%s466 + $0x30] sm:$0xff]
        %v820 = vld [vmem:[%s466 + $0x38] sm:$0xff]
        %v821 = vld [vmem:[%s466 + $0x40] sm:$0xff]
        %v822 = vld [vmem:[%s466 + $0x48] sm:$0xff]
        %v823 = vld [vmem:[%s466 + $0x50] sm:$0xff]
        %v824 = vld [vmem:[%s466 + $0x58] sm:$0xff]
        %v825 = vld [vmem:[%s466 + $0x60] sm:$0xff]
        %v826 = vld [vmem:[%s466 + $0x68] sm:$0xff]
        %v827 = vld [vmem:[%s466 + $0x70] sm:$0xff]
        %v828 = vld [vmem:[%s466 + $0x78] sm:$0xff]
        %v829 = vld [vmem:[%s470] sm:$0x1]
        %v830 = vlaneseq
        %v831 = vand.u32 %v830, 127
        %832 = vset.pattern.permute.xlu0 0
        %833 = vperm.xlu0 %832, %v797
        %v834 = vpop.permute.xlu0 %833
        %835 = vset.pattern.permute.xlu0 0
        %836 = vperm.xlu0 %835, %v798
        %v837 = vpop.permute.xlu0 %836
        %838 = vset.pattern.permute.xlu0 0
        %839 = vperm.xlu0 %838, %v799
        %v840 = vpop.permute.xlu0 %839
        %841 = vset.pattern.permute.xlu0 0
        %842 = vperm.xlu0 %841, %v800
        %v843 = vpop.permute.xlu0 %842
        %844 = vset.pattern.permute.xlu0 0
        %845 = vperm.xlu0 %844, %v801
        %v846 = vpop.permute.xlu0 %845
        %847 = vset.pattern.permute.xlu0 0
        %848 = vperm.xlu0 %847, %v802
        %v849 = vpop.permute.xlu0 %848
        %850 = vset.pattern.permute.xlu0 0
        %851 = vperm.xlu0 %850, %v803
        %v852 = vpop.permute.xlu0 %851
        %853 = vset.pattern.permute.xlu0 0
        %854 = vperm.xlu0 %853, %v804
        %v855 = vpop.permute.xlu0 %854
        %856 = vset.pattern.permute.xlu0 0
        %857 = vperm.xlu0 %856, %v805
        %v858 = vpop.permute.xlu0 %857
        %859 = vset.pattern.permute.xlu0 0
        %860 = vperm.xlu0 %859, %v806
        %v861 = vpop.permute.xlu0 %860
        %862 = vset.pattern.permute.xlu0 0
        %863 = vperm.xlu0 %862, %v807
        %v864 = vpop.permute.xlu0 %863
        %865 = vset.pattern.permute.xlu0 0
        %866 = vperm.xlu0 %865, %v808
        %v867 = vpop.permute.xlu0 %866
        %868 = vset.pattern.permute.xlu0 0
        %869 = vperm.xlu0 %868, %v809
        %v870 = vpop.permute.xlu0 %869
        %871 = vset.pattern.permute.xlu0 0
        %872 = vperm.xlu0 %871, %v810
        %v873 = vpop.permute.xlu0 %872
        %874 = vset.pattern.permute.xlu0 0
        %875 = vperm.xlu0 %874, %v811
        %v876 = vpop.permute.xlu0 %875
        %877 = vset.pattern.permute.xlu0 0
        %878 = vperm.xlu0 %877, %v812
        %v879 = vpop.permute.xlu0 %878
        %vm880 = vcmp.eq.s32.totalorder %v831, %v834
        %vm881 = vcmp.eq.s32.totalorder %v831, %v837
        %vm882 = vcmp.eq.s32.totalorder %v831, %v840
        %vm883 = vcmp.eq.s32.totalorder %v831, %v843
        %vm884 = vcmp.eq.s32.totalorder %v831, %v846
        %vm885 = vcmp.eq.s32.totalorder %v831, %v849
        %vm886 = vcmp.eq.s32.totalorder %v831, %v852
        %vm887 = vcmp.eq.s32.totalorder %v831, %v855
        %vm888 = vcmp.eq.s32.totalorder %v831, %v858
        %vm889 = vcmp.eq.s32.totalorder %v831, %v861
        %vm890 = vcmp.eq.s32.totalorder %v831, %v864
        %vm891 = vcmp.eq.s32.totalorder %v831, %v867
        %vm892 = vcmp.eq.s32.totalorder %v831, %v870
        %vm893 = vcmp.eq.s32.totalorder %v831, %v873
        %vm894 = vcmp.eq.s32.totalorder %v831, %v876
        %vm895 = vcmp.eq.s32.totalorder %v831, %v879
        %v896 = vsel %vm880, 1, 0
        %v897 = vsel %vm881, 1, 0
        %v898 = vsel %vm882, 1, 0
        %v899 = vsel %vm883, 1, 0
        %v900 = vsel %vm884, 1, 0
        %v901 = vsel %vm885, 1, 0
        %v902 = vsel %vm886, 1, 0
        %v903 = vsel %vm887, 1, 0
        %v904 = vsel %vm888, 1, 0
        %v905 = vsel %vm889, 1, 0
        %v906 = vsel %vm890, 1, 0
        %v907 = vsel %vm891, 1, 0
        %v908 = vsel %vm892, 1, 0
        %v909 = vsel %vm893, 1, 0
        %v910 = vsel %vm894, 1, 0
        %v911 = vsel %vm895, 1, 0
        %v912 = vcvt.s32.f32 %v896
        %v913 = vcvt.s32.f32 %v897
        %v914 = vcvt.s32.f32 %v898
        %v915 = vcvt.s32.f32 %v899
        %v916 = vcvt.s32.f32 %v900
        %v917 = vcvt.s32.f32 %v901
        %v918 = vcvt.s32.f32 %v902
        %v919 = vcvt.s32.f32 %v903
        %v920 = vcvt.s32.f32 %v904
        %v921 = vcvt.s32.f32 %v905
        %v922 = vcvt.s32.f32 %v906
        %v923 = vcvt.s32.f32 %v907
        %v924 = vcvt.s32.f32 %v908
        %v925 = vcvt.s32.f32 %v909
        %v926 = vcvt.s32.f32 %v910
        %v927 = vcvt.s32.f32 %v911
        %928 = vset.pattern.permute.xlu0 0
        %929 = vperm.xlu0 %928, %v813
        %v930 = vpop.permute.xlu0 %929
        %931 = vset.pattern.permute.xlu0 0
        %932 = vperm.xlu0 %931, %v814
        %v933 = vpop.permute.xlu0 %932
        %934 = vset.pattern.permute.xlu0 0
        %935 = vperm.xlu0 %934, %v815
        %v936 = vpop.permute.xlu0 %935
        %937 = vset.pattern.permute.xlu0 0
        %938 = vperm.xlu0 %937, %v816
        %v939 = vpop.permute.xlu0 %938
        %940 = vset.pattern.permute.xlu0 0
        %941 = vperm.xlu0 %940, %v817
        %v942 = vpop.permute.xlu0 %941
        %943 = vset.pattern.permute.xlu0 0
        %944 = vperm.xlu0 %943, %v818
        %v945 = vpop.permute.xlu0 %944
        %946 = vset.pattern.permute.xlu0 0
        %947 = vperm.xlu0 %946, %v819
        %v948 = vpop.permute.xlu0 %947
        %949 = vset.pattern.permute.xlu0 0
        %950 = vperm.xlu0 %949, %v820
        %v951 = vpop.permute.xlu0 %950
        %952 = vset.pattern.permute.xlu0 0
        %953 = vperm.xlu0 %952, %v821
        %v954 = vpop.permute.xlu0 %953
        %955 = vset.pattern.permute.xlu0 0
        %956 = vperm.xlu0 %955, %v822
        %v957 = vpop.permute.xlu0 %956
        %958 = vset.pattern.permute.xlu0 0
        %959 = vperm.xlu0 %958, %v823
        %v960 = vpop.permute.xlu0 %959
        %961 = vset.pattern.permute.xlu0 0
        %962 = vperm.xlu0 %961, %v824
        %v963 = vpop.permute.xlu0 %962
        %964 = vset.pattern.permute.xlu0 0
        %965 = vperm.xlu0 %964, %v825
        %v966 = vpop.permute.xlu0 %965
        %967 = vset.pattern.permute.xlu0 0
        %968 = vperm.xlu0 %967, %v826
        %v969 = vpop.permute.xlu0 %968
        %970 = vset.pattern.permute.xlu0 0
        %971 = vperm.xlu0 %970, %v827
        %v972 = vpop.permute.xlu0 %971
        %973 = vset.pattern.permute.xlu0 0
        %974 = vperm.xlu0 %973, %v828
        %v975 = vpop.permute.xlu0 %974
        %vm976 = vcmp.eq.s32.totalorder %v831, %v930
        %vm977 = vcmp.eq.s32.totalorder %v831, %v933
        %vm978 = vcmp.eq.s32.totalorder %v831, %v936
        %vm979 = vcmp.eq.s32.totalorder %v831, %v939
        %vm980 = vcmp.eq.s32.totalorder %v831, %v942
        %vm981 = vcmp.eq.s32.totalorder %v831, %v945
        %vm982 = vcmp.eq.s32.totalorder %v831, %v948
        %vm983 = vcmp.eq.s32.totalorder %v831, %v951
        %vm984 = vcmp.eq.s32.totalorder %v831, %v954
        %vm985 = vcmp.eq.s32.totalorder %v831, %v957
        %vm986 = vcmp.eq.s32.totalorder %v831, %v960
        %vm987 = vcmp.eq.s32.totalorder %v831, %v963
        %vm988 = vcmp.eq.s32.totalorder %v831, %v966
        %vm989 = vcmp.eq.s32.totalorder %v831, %v969
        %vm990 = vcmp.eq.s32.totalorder %v831, %v972
        %vm991 = vcmp.eq.s32.totalorder %v831, %v975
        %v992 = vsel %vm976, 1, 0
        %v993 = vsel %vm977, 1, 0
        %v994 = vsel %vm978, 1, 0
        %v995 = vsel %vm979, 1, 0
        %v996 = vsel %vm980, 1, 0
        %v997 = vsel %vm981, 1, 0
        %v998 = vsel %vm982, 1, 0
        %v999 = vsel %vm983, 1, 0
        %v1000 = vsel %vm984, 1, 0
        %v1001 = vsel %vm985, 1, 0
        %v1002 = vsel %vm986, 1, 0
        %v1003 = vsel %vm987, 1, 0
        %v1004 = vsel %vm988, 1, 0
        %v1005 = vsel %vm989, 1, 0
        %v1006 = vsel %vm990, 1, 0
        %v1007 = vsel %vm991, 1, 0
        %v1008 = vcvt.s32.f32 %v992
        %v1009 = vcvt.s32.f32 %v993
        %v1010 = vcvt.s32.f32 %v994
        %v1011 = vcvt.s32.f32 %v995
        %v1012 = vcvt.s32.f32 %v996
        %v1013 = vcvt.s32.f32 %v997
        %v1014 = vcvt.s32.f32 %v998
        %v1015 = vcvt.s32.f32 %v999
        %v1016 = vcvt.s32.f32 %v1000
        %v1017 = vcvt.s32.f32 %v1001
        %v1018 = vcvt.s32.f32 %v1002
        %v1019 = vcvt.s32.f32 %v1003
        %v1020 = vcvt.s32.f32 %v1004
        %v1021 = vcvt.s32.f32 %v1005
        %v1022 = vcvt.s32.f32 %v1006
        %v1023 = vcvt.s32.f32 %v1007
        %v1024 = vlaneseq
        %v1025 = vshrl.u32 %v1024, 7
        %v1026 = vadd.s32 %v1025, 8
        %v1027 = vadd.s32 %v1025, 16
        %v1028 = vadd.s32 %v1025, 24
        %v1029 = vadd.s32 %v1025, 32
        %v1030 = vadd.s32 %v1025, 40
        %v1031 = vadd.s32 %v1025, 48
        %v1032 = vadd.s32 %v1025, 56
        %v1033 = vlaneseq
        %v1034 = vshrl.u32 %v1033, 7
        %v1035 = vsub.s32 0, %v1034
        %v1036 = vrot.slane %v829, %v1035
        %vm1037 = vcmp.eq.s32.totalorder %v1025, %v1036
        %vm1038 = vcmp.eq.s32.totalorder %v1026, %v1036
        %vm1039 = vcmp.eq.s32.totalorder %v1027, %v1036
        %vm1040 = vcmp.eq.s32.totalorder %v1028, %v1036
        %vm1041 = vcmp.eq.s32.totalorder %v1029, %v1036
        %vm1042 = vcmp.eq.s32.totalorder %v1030, %v1036
        %vm1043 = vcmp.eq.s32.totalorder %v1031, %v1036
        %vm1044 = vcmp.eq.s32.totalorder %v1032, %v1036
        %v1045 = vsel %vm1037, 1, 0
        %v1046 = vsel %vm1038, 1, 0
        %v1047 = vsel %vm1039, 1, 0
        %v1048 = vsel %vm1040, 1, 0
        %v1049 = vsel %vm1041, 1, 0
        %v1050 = vsel %vm1042, 1, 0
        %v1051 = vsel %vm1043, 1, 0
        %v1052 = vsel %vm1044, 1, 0
        %v1053 = vcvt.s32.f32 %v1045
        %v1054 = vcvt.s32.f32 %v1046
        %v1055 = vcvt.s32.f32 %v1047
        %v1056 = vcvt.s32.f32 %v1048
        %v1057 = vcvt.s32.f32 %v1049
        %v1058 = vcvt.s32.f32 %v1050
        %v1059 = vcvt.s32.f32 %v1051
        %v1060 = vcvt.s32.f32 %v1052
        %v1061 = vld [vmem:[#allocation2] sm:$0xff]
        %v1062 = vld [vmem:[#allocation2 + $0x8] sm:$0xff]
        %v1063 = vld [vmem:[#allocation2 + $0x10] sm:$0xff]
        %v1064 = vld [vmem:[#allocation2 + $0x18] sm:$0xff]
        %v1065 = vld [vmem:[#allocation2 + $0x20] sm:$0xff]
        %v1066 = vld [vmem:[#allocation2 + $0x28] sm:$0xff]
        %v1067 = vld [vmem:[#allocation2 + $0x30] sm:$0xff]
        %v1068 = vld [vmem:[#allocation2 + $0x38] sm:$0xff]
        %v1069 = vld [vmem:[#allocation2 + $0x40] sm:$0xff]
        %v1070 = vld [vmem:[#allocation2 + $0x48] sm:$0xff]
        %v1071 = vld [vmem:[#allocation2 + $0x50] sm:$0xff]
        %v1072 = vld [vmem:[#allocation2 + $0x58] sm:$0xff]
        %v1073 = vld [vmem:[#allocation2 + $0x60] sm:$0xff]
        %v1074 = vld [vmem:[#allocation2 + $0x68] sm:$0xff]
        %v1075 = vld [vmem:[#allocation2 + $0x70] sm:$0xff]
        %v1076 = vld [vmem:[#allocation2 + $0x78] sm:$0xff]
        %v1077 = vld [vmem:[#allocation2 + $0x80] sm:$0xff]
        %v1078 = vld [vmem:[#allocation2 + $0x88] sm:$0xff]
        %v1079 = vld [vmem:[#allocation2 + $0x90] sm:$0xff]
        %v1080 = vld [vmem:[#allocation2 + $0x98] sm:$0xff]
        %v1081 = vld [vmem:[#allocation2 + $0xa0] sm:$0xff]
        %v1082 = vld [vmem:[#allocation2 + $0xa8] sm:$0xff]
        %v1083 = vld [vmem:[#allocation2 + $0xb0] sm:$0xff]
        %v1084 = vld [vmem:[#allocation2 + $0xb8] sm:$0xff]
        %v1085 = vld [vmem:[%s454] sm:$0xff]
        %v1086 = vld [vmem:[%s454 + $0x8] sm:$0xff]
        %v1087 = vld [vmem:[%s454 + $0x10] sm:$0xff]
        %v1088 = vld [vmem:[%s454 + $0x18] sm:$0xff]
        %v1089 = vld [vmem:[%s454 + $0x20] sm:$0xff]
        %v1090 = vld [vmem:[%s454 + $0x28] sm:$0xff]
        %v1091 = vld [vmem:[%s454 + $0x30] sm:$0xff]
        %v1092 = vld [vmem:[%s454 + $0x38] sm:$0xff]
        %v1093 = vld [vmem:[%s454 + $0x40] sm:$0xff]
        %v1094 = vld [vmem:[%s454 + $0x48] sm:$0xff]
        %v1095 = vld [vmem:[%s454 + $0x50] sm:$0xff]
        %v1096 = vld [vmem:[%s454 + $0x58] sm:$0xff]
        %v1097 = vld [vmem:[%s454 + $0x60] sm:$0xff]
        %v1098 = vld [vmem:[%s454 + $0x68] sm:$0xff]
        %v1099 = vld [vmem:[%s454 + $0x70] sm:$0xff]
        %v1100 = vld [vmem:[%s454 + $0x78] sm:$0xff]
        %v1101 = vld [vmem:[%s7] sm:$0xff]
        %v1102 = vld [vmem:[%s7 + $0x8] sm:$0xff]
        %v1103 = vld [vmem:[%s7 + $0x10] sm:$0xff]
        %v1104 = vld [vmem:[%s7 + $0x18] sm:$0xff]
        %v1105 = vld [vmem:[%s8] sm:$0x1]
        %v1107 = vlaneseq
        %v1108 = vshrl.u32 %v1107, 7
        %v1109 = vsub.s32 0, %v1108
        %v1110 = vrot.slane %v1105, %v1109
        %vm1112 = vcmask 261120
        %v1114 = vsel %vm1112, %v1085, 0
        %v1117 = vsel %vm1112, %v1086, 0
        %v1120 = vsel %vm1112, %v1087, 0
        %v1123 = vsel %vm1112, %v1088, 0
        %v1126 = vsel %vm1112, %v1089, 0
        %v1129 = vsel %vm1112, %v1090, 0
        %v1132 = vsel %vm1112, %v1091, 0
        %v1135 = vsel %vm1112, %v1092, 0
        %v1138 = vsel %vm1112, %v1093, 0
        %v1141 = vsel %vm1112, %v1094, 0
        %v1144 = vsel %vm1112, %v1095, 0
        %v1147 = vsel %vm1112, %v1096, 0
        %v1150 = vsel %vm1112, %v1097, 0
        %v1153 = vsel %vm1112, %v1098, 0
        %v1156 = vsel %vm1112, %v1099, 0
        %v1159 = vsel %vm1112, %v1100, 0
        %1161 = vmatprep.subr.mxu0 0.0
        %1162 = vmatpush1.msra.mxu0 0.0
        %1163 = vmatprep.subr.mxu0 0.0
        %1164 = vmatpush1.msra.mxu0 0.0
        %1165 = vmatprep.subr.mxu0 0.0
        %1166 = vmatpush1.msra.mxu0 0.0
        %1167 = vmatprep.subr.mxu0 0.0
        %1168 = vmatpush1.msra.mxu0 0.0
        %1169 = vmatprep.subr.mxu0 0.0
        %1170 = vmatpush1.msra.mxu0 0.0
        %1171 = vmatprep.subr.mxu0 0.0
        %1172 = vmatpush1.msra.mxu0 0.0
        %1173 = vmatprep.subr.mxu0 0.0
        %1174 = vmatpush1.msra.mxu0 0.0
        %1175 = vmatprep.subr.mxu0 0.0
        %1176 = vmatpush1.msra.mxu0 0.0
        %1177 = vmatprep.subr.mxu0 0.0
        %1178 = vmatpush1.msra.mxu0 0.0
        %1179 = vmatprep.subr.mxu0 0.0
        %1180 = vmatpush1.msra.mxu0 0.0
        %1181 = vmatprep.subr.mxu0 0.0
        %1182 = vmatpush1.msra.mxu0 0.0
        %1183 = vmatprep.subr.mxu0 0.0
        %1184 = vmatpush1.msra.mxu0 0.0
        %1185 = vmatprep.subr.mxu0 0.0
        %1186 = vmatpush1.msra.mxu0 %v1104
        %1187 = vmatprep.subr.mxu0 0.0
        %1188 = vmatpush1.msra.mxu0 %v1103
        %1189 = vmatprep.subr.mxu0 0.0
        %1190 = vmatpush1.msra.mxu0 %v1102
        %1191 = vmatprep.subr.mxu0 0.0
        %1192 = vmatpush1.msra.mxu0 %v1101
        %1193 = vmatprep.subr.mxu0 0.0
        %1194 = vmatpush2.msra.mxu0 0.0
        %1195 = vmatprep.subr.mxu0 0.0
        %1196 = vmatpush2.msra.mxu0 0.0
        %1197 = vmatprep.subr.mxu0 0.0
        %1198 = vmatpush2.msra.mxu0 0.0
        %1199 = vmatprep.subr.mxu0 0.0
        %1200 = vmatpush2.msra.mxu0 0.0
        %1201 = vmatprep.subr.mxu0 0.0
        %1202 = vmatpush2.msra.mxu0 0.0
        %1203 = vmatprep.subr.mxu0 0.0
        %1204 = vmatpush2.msra.mxu0 0.0
        %1205 = vmatprep.subr.mxu0 0.0
        %1206 = vmatpush2.msra.mxu0 0.0
        %1207 = vmatprep.subr.mxu0 0.0
        %1208 = vmatpush2.msra.mxu0 0.0
        %1209 = vmatprep.subr.mxu0 0.0
        %1210 = vmatpush2.msra.mxu0 0.0
        %1211 = vmatprep.subr.mxu0 0.0
        %1212 = vmatpush2.msra.mxu0 0.0
        %1213 = vmatprep.subr.mxu0 0.0
        %1214 = vmatpush2.msra.mxu0 0.0
        %1215 = vmatprep.subr.mxu0 0.0
        %1216 = vmatpush2.msra.mxu0 0.0
        %1217 = vmatprep.subr.mxu0 0.0
        %1218 = vmatpush2.msra.mxu0 0.0
        %1219 = vmatprep.subr.mxu0 0.0
        %1220 = vmatpush2.msra.mxu0 0.0
        %1221 = vmatprep.subr.mxu0 0.0
        %1222 = vmatpush2.msra.mxu0 0.0
        %1223 = vmatprep.subr.mxu0 0.0
        %1224 = vmatpush2.msra.mxu0 0.0
        %1225 = vmatprep.mubr.f32.mxu0 0.0
        %1226 = vmatmul.mubr.f32.gmra.mxu0 %v1114
        %v1227 = vpop.f32.mrf.mxu0
        %v1228 = vadd.f32 %v1110, %v1227
        %v1229 = vpop.f32.mrf.mxu0
        %1230 = vmatprep.mubr.f32.mxu0 0.0
        %1231 = vmatmul.mubr.f32.gmra.mxu0 %v1117
        %v1232 = vpop.f32.mrf.mxu0
        %v1233 = vadd.f32 %v1110, %v1232
        %v1234 = vpop.f32.mrf.mxu0
        %1235 = vmatprep.mubr.f32.mxu0 0.0
        %1236 = vmatmul.mubr.f32.gmra.mxu0 %v1120
        %v1237 = vpop.f32.mrf.mxu0
        %v1238 = vadd.f32 %v1110, %v1237
        %v1239 = vpop.f32.mrf.mxu0
        %1240 = vmatprep.mubr.f32.mxu0 0.0
        %1241 = vmatmul.mubr.f32.gmra.mxu0 %v1123
        %v1242 = vpop.f32.mrf.mxu0
        %v1243 = vadd.f32 %v1110, %v1242
        %v1244 = vpop.f32.mrf.mxu0
        %1245 = vmatprep.mubr.f32.mxu0 0.0
        %1246 = vmatmul.mubr.f32.gmra.mxu0 %v1126
        %v1247 = vpop.f32.mrf.mxu0
        %v1248 = vadd.f32 %v1110, %v1247
        %v1249 = vpop.f32.mrf.mxu0
        %1250 = vmatprep.mubr.f32.mxu0 0.0
        %1251 = vmatmul.mubr.f32.gmra.mxu0 %v1129
        %v1252 = vpop.f32.mrf.mxu0
        %v1253 = vadd.f32 %v1110, %v1252
        %v1254 = vpop.f32.mrf.mxu0
        %1255 = vmatprep.mubr.f32.mxu0 0.0
        %1256 = vmatmul.mubr.f32.gmra.mxu0 %v1132
        %v1257 = vpop.f32.mrf.mxu0
        %v1258 = vadd.f32 %v1110, %v1257
        %v1259 = vpop.f32.mrf.mxu0
        %1260 = vmatprep.mubr.f32.mxu0 0.0
        %1261 = vmatmul.mubr.f32.gmra.mxu0 %v1135
        %v1262 = vpop.f32.mrf.mxu0
        %v1263 = vadd.f32 %v1110, %v1262
        %v1264 = vpop.f32.mrf.mxu0
        %1265 = vmatprep.mubr.f32.mxu0 0.0
        %1266 = vmatmul.mubr.f32.gmra.mxu0 %v1138
        %v1267 = vpop.f32.mrf.mxu0
        %v1268 = vadd.f32 %v1110, %v1267
        %v1269 = vpop.f32.mrf.mxu0
        %1270 = vmatprep.mubr.f32.mxu0 0.0
        %1271 = vmatmul.mubr.f32.gmra.mxu0 %v1141
        %v1272 = vpop.f32.mrf.mxu0
        %v1273 = vadd.f32 %v1110, %v1272
        %v1274 = vpop.f32.mrf.mxu0
        %1275 = vmatprep.mubr.f32.mxu0 0.0
        %1276 = vmatmul.mubr.f32.gmra.mxu0 %v1144
        %v1277 = vpop.f32.mrf.mxu0
        %v1278 = vadd.f32 %v1110, %v1277
        %v1279 = vpop.f32.mrf.mxu0
        %1280 = vmatprep.mubr.f32.mxu0 0.0
        %1281 = vmatmul.mubr.f32.gmra.mxu0 %v1147
        %v1282 = vpop.f32.mrf.mxu0
        %v1283 = vadd.f32 %v1110, %v1282
        %v1284 = vpop.f32.mrf.mxu0
        %1285 = vmatprep.mubr.f32.mxu0 0.0
        %1286 = vmatmul.mubr.f32.gmra.mxu0 %v1150
        %v1287 = vpop.f32.mrf.mxu0
        %v1288 = vadd.f32 %v1110, %v1287
        %v1289 = vpop.f32.mrf.mxu0
        %1290 = vmatprep.mubr.f32.mxu0 0.0
        %1291 = vmatmul.mubr.f32.gmra.mxu0 %v1153
        %v1292 = vpop.f32.mrf.mxu0
        %v1293 = vadd.f32 %v1110, %v1292
        %v1294 = vpop.f32.mrf.mxu0
        %1295 = vmatprep.mubr.f32.mxu0 0.0
        %1296 = vmatmul.mubr.f32.gmra.mxu0 %v1156
        %v1297 = vpop.f32.mrf.mxu0
        %v1298 = vadd.f32 %v1110, %v1297
        %v1299 = vpop.f32.mrf.mxu0
        %1300 = vmatprep.mubr.f32.mxu0 0.0
        %1301 = vmatmul.mubr.f32.gmra.mxu0 %v1159
        %v1302 = vpop.f32.mrf.mxu0
        %v1303 = vadd.f32 %v1110, %v1302
        %v1304 = vpop.f32.mrf.mxu0
        %1305 = vdwg.mxu0
        %vm1306 = vcmask 523264
        %v1308 = vsel %vm1306, %v912, 0
        %v1311 = vsel %vm1306, %v913, 0
        %v1314 = vsel %vm1306, %v914, 0
        %v1317 = vsel %vm1306, %v915, 0
        %v1320 = vsel %vm1306, %v916, 0
        %v1323 = vsel %vm1306, %v917, 0
        %v1326 = vsel %vm1306, %v918, 0
        %v1329 = vsel %vm1306, %v919, 0
        %v1332 = vsel %vm1306, %v920, 0
        %v1335 = vsel %vm1306, %v921, 0
        %v1338 = vsel %vm1306, %v922, 0
        %v1341 = vsel %vm1306, %v923, 0
        %v1344 = vsel %vm1306, %v924, 0
        %v1347 = vsel %vm1306, %v925, 0
        %v1350 = vsel %vm1306, %v926, 0
        %v1353 = vsel %vm1306, %v927, 0
        %1355 = vmatprep.subr.mxu0 0.0
        %1356 = vmatpush1.msra.mxu0 0.0
        %1357 = vmatprep.subr.mxu0 0.0
        %1358 = vmatpush1.msra.mxu0 0.0
        %1359 = vmatprep.subr.mxu0 0.0
        %1360 = vmatpush1.msra.mxu0 0.0
        %1361 = vmatprep.subr.mxu0 0.0
        %1362 = vmatpush1.msra.mxu0 0.0
        %1363 = vmatprep.subr.mxu0 0.0
        %1364 = vmatpush1.msra.mxu0 0.0
        %1365 = vmatprep.subr.mxu0 0.0
        %1366 = vmatpush1.msra.mxu0 0.0
        %1367 = vmatprep.subr.mxu0 0.0
        %1368 = vmatpush1.msra.mxu0 0.0
        %1369 = vmatprep.subr.mxu0 0.0
        %1370 = vmatpush1.msra.mxu0 0.0
        %1371 = vmatprep.subr.mxu0 %v1084
        %1372 = vmatpush1.msra.mxu0 %v1083
        %1373 = vmatprep.subr.mxu0 %v1081
        %1374 = vmatpush1.msra.mxu0 %v1080
        %1375 = vmatprep.subr.mxu0 %v1078
        %1376 = vmatpush1.msra.mxu0 %v1077
        %1377 = vmatprep.subr.mxu0 %v1075
        %1378 = vmatpush1.msra.mxu0 %v1074
        %1379 = vmatprep.subr.mxu0 %v1072
        %1380 = vmatpush1.msra.mxu0 %v1071
        %1381 = vmatprep.subr.mxu0 %v1069
        %1382 = vmatpush1.msra.mxu0 %v1068
        %1383 = vmatprep.subr.mxu0 %v1066
        %1384 = vmatpush1.msra.mxu0 %v1065
        %1385 = vmatprep.subr.mxu0 %v1063
        %1386 = vmatpush1.msra.mxu0 %v1062
        %1387 = vmatprep.subr.mxu0 0.0
        %1388 = vmatpush2.msra.mxu0 0.0
        %1389 = vmatprep.subr.mxu0 0.0
        %1390 = vmatpush2.msra.mxu0 0.0
        %1391 = vmatprep.subr.mxu0 0.0
        %1392 = vmatpush2.msra.mxu0 0.0
        %1393 = vmatprep.subr.mxu0 0.0
        %1394 = vmatpush2.msra.mxu0 0.0
        %1395 = vmatprep.subr.mxu0 0.0
        %1396 = vmatpush2.msra.mxu0 0.0
        %1397 = vmatprep.subr.mxu0 0.0
        %1398 = vmatpush2.msra.mxu0 0.0
        %1399 = vmatprep.subr.mxu0 0.0
        %1400 = vmatpush2.msra.mxu0 0.0
        %1401 = vmatprep.subr.mxu0 0.0
        %1402 = vmatpush2.msra.mxu0 0.0
        %1403 = vmatprep.subr.mxu0 0.0
        %1404 = vmatpush2.msra.mxu0 0.0
        %1405 = vmatprep.subr.mxu0 0.0
        %1406 = vmatpush2.msra.mxu0 0.0
        %1407 = vmatprep.subr.mxu0 0.0
        %1408 = vmatpush2.msra.mxu0 0.0
        %1409 = vmatprep.subr.mxu0 0.0
        %1410 = vmatpush2.msra.mxu0 0.0
        %1411 = vmatprep.subr.mxu0 0.0
        %1412 = vmatpush2.msra.mxu0 0.0
        %1413 = vmatprep.subr.mxu0 0.0
        %1414 = vmatpush2.msra.mxu0 0.0
        %1415 = vmatprep.subr.mxu0 0.0
        %1416 = vmatpush2.msra.mxu0 0.0
        %1417 = vmatprep.subr.mxu0 0.0
        %1418 = vmatpush2.msra.mxu0 0.0
        %1419 = vmatprep.mubr.f32.mxu0 0.0
        %1420 = vmatmul.mubr.f32.gmra.mxu0 %v1308
        %v1421 = vpop.f32.mrf.mxu0
        %v1422 = vadd.f32 0.0, %v1421
        %v1423 = vpop.f32.mrf.mxu0
        %v1424 = vadd.f32 0.0, %v1423
        %1425 = vmatprep.mubr.f32.mxu0 0.0
        %1426 = vmatmul.mubr.f32.gmra.mxu0 %v1311
        %v1427 = vpop.f32.mrf.mxu0
        %v1428 = vadd.f32 0.0, %v1427
        %v1429 = vpop.f32.mrf.mxu0
        %v1430 = vadd.f32 0.0, %v1429
        %1431 = vmatprep.mubr.f32.mxu0 0.0
        %1432 = vmatmul.mubr.f32.gmra.mxu0 %v1314
        %v1433 = vpop.f32.mrf.mxu0
        %v1434 = vadd.f32 0.0, %v1433
        %v1435 = vpop.f32.mrf.mxu0
        %v1436 = vadd.f32 0.0, %v1435
        %1437 = vmatprep.mubr.f32.mxu0 0.0
        %1438 = vmatmul.mubr.f32.gmra.mxu0 %v1317
        %v1439 = vpop.f32.mrf.mxu0
        %v1440 = vadd.f32 0.0, %v1439
        %v1441 = vpop.f32.mrf.mxu0
        %v1442 = vadd.f32 0.0, %v1441
        %1443 = vmatprep.mubr.f32.mxu0 0.0
        %1444 = vmatmul.mubr.f32.gmra.mxu0 %v1320
        %v1445 = vpop.f32.mrf.mxu0
        %v1446 = vadd.f32 0.0, %v1445
        %v1447 = vpop.f32.mrf.mxu0
        %v1448 = vadd.f32 0.0, %v1447
        %1449 = vmatprep.mubr.f32.mxu0 0.0
        %1450 = vmatmul.mubr.f32.gmra.mxu0 %v1323
        %v1451 = vpop.f32.mrf.mxu0
        %v1452 = vadd.f32 0.0, %v1451
        %v1453 = vpop.f32.mrf.mxu0
        %v1454 = vadd.f32 0.0, %v1453
        %1455 = vmatprep.mubr.f32.mxu0 0.0
        %1456 = vmatmul.mubr.f32.gmra.mxu0 %v1326
        %v1457 = vpop.f32.mrf.mxu0
        %v1458 = vadd.f32 0.0, %v1457
        %v1459 = vpop.f32.mrf.mxu0
        %v1460 = vadd.f32 0.0, %v1459
        %1461 = vmatprep.mubr.f32.mxu0 0.0
        %1462 = vmatmul.mubr.f32.gmra.mxu0 %v1329
        %v1463 = vpop.f32.mrf.mxu0
        %v1464 = vadd.f32 0.0, %v1463
        %v1465 = vpop.f32.mrf.mxu0
        %v1466 = vadd.f32 0.0, %v1465
        %1467 = vmatprep.mubr.f32.mxu0 0.0
        %1468 = vmatmul.mubr.f32.gmra.mxu0 %v1332
        %v1469 = vpop.f32.mrf.mxu0
        %v1470 = vadd.f32 0.0, %v1469
        %v1471 = vpop.f32.mrf.mxu0
        %v1472 = vadd.f32 0.0, %v1471
        %1473 = vmatprep.mubr.f32.mxu0 0.0
        %1474 = vmatmul.mubr.f32.gmra.mxu0 %v1335
        %v1475 = vpop.f32.mrf.mxu0
        %v1476 = vadd.f32 0.0, %v1475
        %v1477 = vpop.f32.mrf.mxu0
        %v1478 = vadd.f32 0.0, %v1477
        %1479 = vmatprep.mubr.f32.mxu0 0.0
        %1480 = vmatmul.mubr.f32.gmra.mxu0 %v1338
        %v1481 = vpop.f32.mrf.mxu0
        %v1482 = vadd.f32 0.0, %v1481
        %v1483 = vpop.f32.mrf.mxu0
        %v1484 = vadd.f32 0.0, %v1483
        %1485 = vmatprep.mubr.f32.mxu0 0.0
        %1486 = vmatmul.mubr.f32.gmra.mxu0 %v1341
        %v1487 = vpop.f32.mrf.mxu0
        %v1488 = vadd.f32 0.0, %v1487
        %v1489 = vpop.f32.mrf.mxu0
        %v1490 = vadd.f32 0.0, %v1489
        %1491 = vmatprep.mubr.f32.mxu0 0.0
        %1492 = vmatmul.mubr.f32.gmra.mxu0 %v1344
        %v1493 = vpop.f32.mrf.mxu0
        %v1494 = vadd.f32 0.0, %v1493
        %v1495 = vpop.f32.mrf.mxu0
        %v1496 = vadd.f32 0.0, %v1495
        %1497 = vmatprep.mubr.f32.mxu0 0.0
        %1498 = vmatmul.mubr.f32.gmra.mxu0 %v1347
        %v1499 = vpop.f32.mrf.mxu0
        %v1500 = vadd.f32 0.0, %v1499
        %v1501 = vpop.f32.mrf.mxu0
        %v1502 = vadd.f32 0.0, %v1501
        %1503 = vmatprep.mubr.f32.mxu0 0.0
        %1504 = vmatmul.mubr.f32.gmra.mxu0 %v1350
        %v1505 = vpop.f32.mrf.mxu0
        %v1506 = vadd.f32 0.0, %v1505
        %v1507 = vpop.f32.mrf.mxu0
        %v1508 = vadd.f32 0.0, %v1507
        %1509 = vmatprep.mubr.f32.mxu0 0.0
        %1510 = vmatmul.mubr.f32.gmra.mxu0 %v1353
        %v1511 = vpop.f32.mrf.mxu0
        %v1512 = vadd.f32 0.0, %v1511
        %v1513 = vpop.f32.mrf.mxu0
        %v1514 = vadd.f32 0.0, %v1513
        %1515 = vdwg.mxu0
        %v1517 = vsel %vm1306, %v1008, 0
        %v1520 = vsel %vm1306, %v1009, 0
        %v1523 = vsel %vm1306, %v1010, 0
        %v1526 = vsel %vm1306, %v1011, 0
        %v1529 = vsel %vm1306, %v1012, 0
        %v1532 = vsel %vm1306, %v1013, 0
        %v1535 = vsel %vm1306, %v1014, 0
        %v1538 = vsel %vm1306, %v1015, 0
        %v1541 = vsel %vm1306, %v1016, 0
        %v1544 = vsel %vm1306, %v1017, 0
        %v1547 = vsel %vm1306, %v1018, 0
        %v1550 = vsel %vm1306, %v1019, 0
        %v1553 = vsel %vm1306, %v1020, 0
        %v1556 = vsel %vm1306, %v1021, 0
        %v1559 = vsel %vm1306, %v1022, 0
        %v1562 = vsel %vm1306, %v1023, 0
        %1564 = vmatprep.subr.mxu0 0.0
        %1565 = vmatpush1.msra.mxu0 0.0
        %1566 = vmatprep.subr.mxu0 0.0
        %1567 = vmatpush1.msra.mxu0 0.0
        %1568 = vmatprep.subr.mxu0 0.0
        %1569 = vmatpush1.msra.mxu0 0.0
        %1570 = vmatprep.subr.mxu0 0.0
        %1571 = vmatpush1.msra.mxu0 0.0
        %1572 = vmatprep.subr.mxu0 0.0
        %1573 = vmatpush1.msra.mxu0 0.0
        %1574 = vmatprep.subr.mxu0 0.0
        %1575 = vmatpush1.msra.mxu0 0.0
        %1576 = vmatprep.subr.mxu0 0.0
        %1577 = vmatpush1.msra.mxu0 0.0
        %1578 = vmatprep.subr.mxu0 0.0
        %1579 = vmatpush1.msra.mxu0 0.0
        %1580 = vmatprep.subr.mxu0 0.0
        %1581 = vmatpush1.msra.mxu0 %v1082
        %1582 = vmatprep.subr.mxu0 0.0
        %1583 = vmatpush1.msra.mxu0 %v1079
        %1584 = vmatprep.subr.mxu0 0.0
        %1585 = vmatpush1.msra.mxu0 %v1076
        %1586 = vmatprep.subr.mxu0 0.0
        %1587 = vmatpush1.msra.mxu0 %v1073
        %1588 = vmatprep.subr.mxu0 0.0
        %1589 = vmatpush1.msra.mxu0 %v1070
        %1590 = vmatprep.subr.mxu0 0.0
        %1591 = vmatpush1.msra.mxu0 %v1067
        %1592 = vmatprep.subr.mxu0 0.0
        %1593 = vmatpush1.msra.mxu0 %v1064
        %1594 = vmatprep.subr.mxu0 0.0
        %1595 = vmatpush1.msra.mxu0 %v1061
        %1596 = vmatprep.subr.mxu0 0.0
        %1597 = vmatpush2.msra.mxu0 0.0
        %1598 = vmatprep.subr.mxu0 0.0
        %1599 = vmatpush2.msra.mxu0 0.0
        %1600 = vmatprep.subr.mxu0 0.0
        %1601 = vmatpush2.msra.mxu0 0.0
        %1602 = vmatprep.subr.mxu0 0.0
        %1603 = vmatpush2.msra.mxu0 0.0
        %1604 = vmatprep.subr.mxu0 0.0
        %1605 = vmatpush2.msra.mxu0 0.0
        %1606 = vmatprep.subr.mxu0 0.0
        %1607 = vmatpush2.msra.mxu0 0.0
        %1608 = vmatprep.subr.mxu0 0.0
        %1609 = vmatpush2.msra.mxu0 0.0
        %1610 = vmatprep.subr.mxu0 0.0
        %1611 = vmatpush2.msra.mxu0 0.0
        %1612 = vmatprep.subr.mxu0 0.0
        %1613 = vmatpush2.msra.mxu0 0.0
        %1614 = vmatprep.subr.mxu0 0.0
        %1615 = vmatpush2.msra.mxu0 0.0
        %1616 = vmatprep.subr.mxu0 0.0
        %1617 = vmatpush2.msra.mxu0 0.0
        %1618 = vmatprep.subr.mxu0 0.0
        %1619 = vmatpush2.msra.mxu0 0.0
        %1620 = vmatprep.subr.mxu0 0.0
        %1621 = vmatpush2.msra.mxu0 0.0
        %1622 = vmatprep.subr.mxu0 0.0
        %1623 = vmatpush2.msra.mxu0 0.0
        %1624 = vmatprep.subr.mxu0 0.0
        %1625 = vmatpush2.msra.mxu0 0.0
        %1626 = vmatprep.subr.mxu0 0.0
        %1627 = vmatpush2.msra.mxu0 0.0
        %1628 = vmatprep.mubr.f32.mxu0 0.0
        %1629 = vmatmul.mubr.f32.gmra.mxu0 %v1517
        %v1630 = vpop.f32.mrf.mxu0
        %v1631 = vadd.f32 0.0, %v1630
        %v1632 = vpop.f32.mrf.mxu0
        %1633 = vmatprep.mubr.f32.mxu0 0.0
        %1634 = vmatmul.mubr.f32.gmra.mxu0 %v1520
        %v1635 = vpop.f32.mrf.mxu0
        %v1636 = vadd.f32 0.0, %v1635
        %v1637 = vpop.f32.mrf.mxu0
        %1638 = vmatprep.mubr.f32.mxu0 0.0
        %1639 = vmatmul.mubr.f32.gmra.mxu0 %v1523
        %v1640 = vpop.f32.mrf.mxu0
        %v1641 = vadd.f32 0.0, %v1640
        %v1642 = vpop.f32.mrf.mxu0
        %1643 = vmatprep.mubr.f32.mxu0 0.0
        %1644 = vmatmul.mubr.f32.gmra.mxu0 %v1526
        %v1645 = vpop.f32.mrf.mxu0
        %v1646 = vadd.f32 0.0, %v1645
        %v1647 = vpop.f32.mrf.mxu0
        %1648 = vmatprep.mubr.f32.mxu0 0.0
        %1649 = vmatmul.mubr.f32.gmra.mxu0 %v1529
        %v1650 = vpop.f32.mrf.mxu0
        %v1651 = vadd.f32 0.0, %v1650
        %v1652 = vpop.f32.mrf.mxu0
        %1653 = vmatprep.mubr.f32.mxu0 0.0
        %1654 = vmatmul.mubr.f32.gmra.mxu0 %v1532
        %v1655 = vpop.f32.mrf.mxu0
        %v1656 = vadd.f32 0.0, %v1655
        %v1657 = vpop.f32.mrf.mxu0
        %1658 = vmatprep.mubr.f32.mxu0 0.0
        %1659 = vmatmul.mubr.f32.gmra.mxu0 %v1535
        %v1660 = vpop.f32.mrf.mxu0
        %v1661 = vadd.f32 0.0, %v1660
        %v1662 = vpop.f32.mrf.mxu0
        %1663 = vmatprep.mubr.f32.mxu0 0.0
        %1664 = vmatmul.mubr.f32.gmra.mxu0 %v1538
        %v1665 = vpop.f32.mrf.mxu0
        %v1666 = vadd.f32 0.0, %v1665
        %v1667 = vpop.f32.mrf.mxu0
        %1668 = vmatprep.mubr.f32.mxu0 0.0
        %1669 = vmatmul.mubr.f32.gmra.mxu0 %v1541
        %v1670 = vpop.f32.mrf.mxu0
        %v1671 = vadd.f32 0.0, %v1670
        %v1672 = vpop.f32.mrf.mxu0
        %1673 = vmatprep.mubr.f32.mxu0 0.0
        %1674 = vmatmul.mubr.f32.gmra.mxu0 %v1544
        %v1675 = vpop.f32.mrf.mxu0
        %v1676 = vadd.f32 0.0, %v1675
        %v1677 = vpop.f32.mrf.mxu0
        %1678 = vmatprep.mubr.f32.mxu0 0.0
        %1679 = vmatmul.mubr.f32.gmra.mxu0 %v1547
        %v1680 = vpop.f32.mrf.mxu0
        %v1681 = vadd.f32 0.0, %v1680
        %v1682 = vpop.f32.mrf.mxu0
        %1683 = vmatprep.mubr.f32.mxu0 0.0
        %1684 = vmatmul.mubr.f32.gmra.mxu0 %v1550
        %v1685 = vpop.f32.mrf.mxu0
        %v1686 = vadd.f32 0.0, %v1685
        %v1687 = vpop.f32.mrf.mxu0
        %1688 = vmatprep.mubr.f32.mxu0 0.0
        %1689 = vmatmul.mubr.f32.gmra.mxu0 %v1553
        %v1690 = vpop.f32.mrf.mxu0
        %v1691 = vadd.f32 0.0, %v1690
        %v1692 = vpop.f32.mrf.mxu0
        %1693 = vmatprep.mubr.f32.mxu0 0.0
        %1694 = vmatmul.mubr.f32.gmra.mxu0 %v1556
        %v1695 = vpop.f32.mrf.mxu0
        %v1696 = vadd.f32 0.0, %v1695
        %v1697 = vpop.f32.mrf.mxu0
        %1698 = vmatprep.mubr.f32.mxu0 0.0
        %1699 = vmatmul.mubr.f32.gmra.mxu0 %v1559
        %v1700 = vpop.f32.mrf.mxu0
        %v1701 = vadd.f32 0.0, %v1700
        %v1702 = vpop.f32.mrf.mxu0
        %1703 = vmatprep.mubr.f32.mxu0 0.0
        %1704 = vmatmul.mubr.f32.gmra.mxu0 %v1562
        %v1705 = vpop.f32.mrf.mxu0
        %v1706 = vadd.f32 0.0, %v1705
        %v1707 = vpop.f32.mrf.mxu0
        %1708 = vdwg.mxu0
        %v1709 = vmul.f32 %v1422, %v1631
        %v1710 = vmul.f32 %v1428, %v1636
        %v1711 = vmul.f32 %v1434, %v1641
        %v1712 = vmul.f32 %v1440, %v1646
        %v1713 = vmul.f32 %v1446, %v1651
        %v1714 = vmul.f32 %v1452, %v1656
        %v1715 = vmul.f32 %v1458, %v1661
        %v1716 = vmul.f32 %v1464, %v1666
        %v1717 = vmul.f32 %v1470, %v1671
        %v1718 = vmul.f32 %v1476, %v1676
        %v1719 = vmul.f32 %v1482, %v1681
        %v1720 = vmul.f32 %v1488, %v1686
        %v1721 = vmul.f32 %v1494, %v1691
        %v1722 = vmul.f32 %v1500, %v1696
        %v1723 = vmul.f32 %v1506, %v1701
        %v1724 = vmul.f32 %v1512, %v1706
        %v1725 = vmul.f32 %v1709, %v1228
        %v1726 = vmul.f32 %v1710, %v1233
        %v1727 = vmul.f32 %v1711, %v1238
        %v1728 = vmul.f32 %v1712, %v1243
        %v1729 = vmul.f32 %v1713, %v1248
        %v1730 = vmul.f32 %v1714, %v1253
        %v1731 = vmul.f32 %v1715, %v1258
        %v1732 = vmul.f32 %v1716, %v1263
        %v1733 = vmul.f32 %v1717, %v1268
        %v1734 = vmul.f32 %v1718, %v1273
        %v1735 = vmul.f32 %v1719, %v1278
        %v1736 = vmul.f32 %v1720, %v1283
        %v1737 = vmul.f32 %v1721, %v1288
        %v1738 = vmul.f32 %v1722, %v1293
        %v1739 = vmul.f32 %v1723, %v1298
        %v1740 = vmul.f32 %v1724, %v1303
        %1741 = vst [vmem:[%s447] sm:$0xff] %v1725
        %1742 = vst [vmem:[%s447 + $0x8] sm:$0xff] %v1726
        %1743 = vst [vmem:[%s447 + $0x10] sm:$0xff] %v1727
        %1744 = vst [vmem:[%s447 + $0x18] sm:$0xff] %v1728
        %1745 = vst [vmem:[%s447 + $0x20] sm:$0xff] %v1729
        %1746 = vst [vmem:[%s447 + $0x28] sm:$0xff] %v1730
        %1747 = vst [vmem:[%s447 + $0x30] sm:$0xff] %v1731
        %1748 = vst [vmem:[%s447 + $0x38] sm:$0xff] %v1732
        %1749 = vst [vmem:[%s447 + $0x40] sm:$0xff] %v1733
        %1750 = vst [vmem:[%s447 + $0x48] sm:$0xff] %v1734
        %1751 = vst [vmem:[%s447 + $0x50] sm:$0xff] %v1735
        %1752 = vst [vmem:[%s447 + $0x58] sm:$0xff] %v1736
        %1753 = vst [vmem:[%s447 + $0x60] sm:$0xff] %v1737
        %1754 = vst [vmem:[%s447 + $0x68] sm:$0xff] %v1738
        %1755 = vst [vmem:[%s447 + $0x70] sm:$0xff] %v1739
        %1756 = vst [vmem:[%s447 + $0x78] sm:$0xff] %v1740
        %v1757 = vld [vmem:[%s9] sm:$0xff]
        %v1758 = vld [vmem:[%s9 + $0x8] sm:$0xff]
        %v1759 = vld [vmem:[%s9 + $0x10] sm:$0xff]
        %v1760 = vld [vmem:[%s9 + $0x18] sm:$0xff]
        %v1761 = vld [vmem:[%s9 + $0x20] sm:$0xff]
        %v1762 = vld [vmem:[%s9 + $0x28] sm:$0xff]
        %v1763 = vld [vmem:[%s9 + $0x30] sm:$0xff]
        %v1764 = vld [vmem:[%s9 + $0x38] sm:$0xff]
        %v1765 = vld [vmem:[%s9 + $0x40] sm:$0xff]
        %v1766 = vld [vmem:[%s9 + $0x48] sm:$0xff]
        %v1767 = vld [vmem:[%s9 + $0x50] sm:$0xff]
        %v1768 = vld [vmem:[%s9 + $0x58] sm:$0xff]
        %v1769 = vld [vmem:[%s9 + $0x60] sm:$0xff]
        %v1770 = vld [vmem:[%s9 + $0x68] sm:$0xff]
        %v1771 = vld [vmem:[%s9 + $0x70] sm:$0xff]
        %v1772 = vld [vmem:[%s9 + $0x78] sm:$0xff]
        %1773 = vmatprep.subr.mxu0 0.0
        %1774 = vmatpush1.msra.mxu0 %v1772
        %1775 = vmatprep.subr.mxu0 0.0
        %1776 = vmatpush1.msra.mxu0 %v1771
        %1777 = vmatprep.subr.mxu0 0.0
        %1778 = vmatpush1.msra.mxu0 %v1770
        %1779 = vmatprep.subr.mxu0 0.0
        %1780 = vmatpush1.msra.mxu0 %v1769
        %1781 = vmatprep.subr.mxu0 0.0
        %1782 = vmatpush1.msra.mxu0 %v1768
        %1783 = vmatprep.subr.mxu0 0.0
        %1784 = vmatpush1.msra.mxu0 %v1767
        %1785 = vmatprep.subr.mxu0 0.0
        %1786 = vmatpush1.msra.mxu0 %v1766
        %1787 = vmatprep.subr.mxu0 0.0
        %1788 = vmatpush1.msra.mxu0 %v1765
        %1789 = vmatprep.subr.mxu0 0.0
        %1790 = vmatpush1.msra.mxu0 %v1764
        %1791 = vmatprep.subr.mxu0 0.0
        %1792 = vmatpush1.msra.mxu0 %v1763
        %1793 = vmatprep.subr.mxu0 0.0
        %1794 = vmatpush1.msra.mxu0 %v1762
        %1795 = vmatprep.subr.mxu0 0.0
        %1796 = vmatpush1.msra.mxu0 %v1761
        %1797 = vmatprep.subr.mxu0 0.0
        %1798 = vmatpush1.msra.mxu0 %v1760
        %1799 = vmatprep.subr.mxu0 0.0
        %1800 = vmatpush1.msra.mxu0 %v1759
        %1801 = vmatprep.subr.mxu0 0.0
        %1802 = vmatpush1.msra.mxu0 %v1758
        %1803 = vmatprep.subr.mxu0 0.0
        %1804 = vmatpush1.msra.mxu0 %v1757
        %1805 = vmatprep.subr.mxu0 0.0
        %1806 = vmatpush2.msra.mxu0 0.0
        %1807 = vmatprep.subr.mxu0 0.0
        %1808 = vmatpush2.msra.mxu0 0.0
        %1809 = vmatprep.subr.mxu0 0.0
        %1810 = vmatpush2.msra.mxu0 0.0
        %1811 = vmatprep.subr.mxu0 0.0
        %1812 = vmatpush2.msra.mxu0 0.0
        %1813 = vmatprep.subr.mxu0 0.0
        %1814 = vmatpush2.msra.mxu0 0.0
        %1815 = vmatprep.subr.mxu0 0.0
        %1816 = vmatpush2.msra.mxu0 0.0
        %1817 = vmatprep.subr.mxu0 0.0
        %1818 = vmatpush2.msra.mxu0 0.0
        %1819 = vmatprep.subr.mxu0 0.0
        %1820 = vmatpush2.msra.mxu0 0.0
        %1821 = vmatprep.subr.mxu0 0.0
        %1822 = vmatpush2.msra.mxu0 0.0
        %1823 = vmatprep.subr.mxu0 0.0
        %1824 = vmatpush2.msra.mxu0 0.0
        %1825 = vmatprep.subr.mxu0 0.0
        %1826 = vmatpush2.msra.mxu0 0.0
        %1827 = vmatprep.subr.mxu0 0.0
        %1828 = vmatpush2.msra.mxu0 0.0
        %1829 = vmatprep.subr.mxu0 0.0
        %1830 = vmatpush2.msra.mxu0 0.0
        %1831 = vmatprep.subr.mxu0 0.0
        %1832 = vmatpush2.msra.mxu0 0.0
        %1833 = vmatprep.subr.mxu0 0.0
        %1834 = vmatpush2.msra.mxu0 0.0
        %1835 = vmatprep.subr.mxu0 0.0
        %1836 = vmatpush2.msra.mxu0 0.0
        %1837 = vmatprep.mubr.f32.mxu0 0.0
        %1838 = vmatmul.mubr.f32.gmra.mxu0 %v1725
        %v1839 = vpop.f32.mrf.mxu0
        %v1840 = vadd.f32 0.0, %v1839
        %v1841 = vpop.f32.mrf.mxu0
        %1842 = vmatprep.mubr.f32.mxu0 0.0
        %1843 = vmatmul.mubr.f32.gmra.mxu0 %v1726
        %v1844 = vpop.f32.mrf.mxu0
        %v1845 = vadd.f32 0.0, %v1844
        %v1846 = vpop.f32.mrf.mxu0
        %1847 = vmatprep.mubr.f32.mxu0 0.0
        %1848 = vmatmul.mubr.f32.gmra.mxu0 %v1727
        %v1849 = vpop.f32.mrf.mxu0
        %v1850 = vadd.f32 0.0, %v1849
        %v1851 = vpop.f32.mrf.mxu0
        %1852 = vmatprep.mubr.f32.mxu0 0.0
        %1853 = vmatmul.mubr.f32.gmra.mxu0 %v1728
        %v1854 = vpop.f32.mrf.mxu0
        %v1855 = vadd.f32 0.0, %v1854
        %v1856 = vpop.f32.mrf.mxu0
        %1857 = vmatprep.mubr.f32.mxu0 0.0
        %1858 = vmatmul.mubr.f32.gmra.mxu0 %v1729
        %v1859 = vpop.f32.mrf.mxu0
        %v1860 = vadd.f32 0.0, %v1859
        %v1861 = vpop.f32.mrf.mxu0
        %1862 = vmatprep.mubr.f32.mxu0 0.0
        %1863 = vmatmul.mubr.f32.gmra.mxu0 %v1730
        %v1864 = vpop.f32.mrf.mxu0
        %v1865 = vadd.f32 0.0, %v1864
        %v1866 = vpop.f32.mrf.mxu0
        %1867 = vmatprep.mubr.f32.mxu0 0.0
        %1868 = vmatmul.mubr.f32.gmra.mxu0 %v1731
        %v1869 = vpop.f32.mrf.mxu0
        %v1870 = vadd.f32 0.0, %v1869
        %v1871 = vpop.f32.mrf.mxu0
        %1872 = vmatprep.mubr.f32.mxu0 0.0
        %1873 = vmatmul.mubr.f32.gmra.mxu0 %v1732
        %v1874 = vpop.f32.mrf.mxu0
        %v1875 = vadd.f32 0.0, %v1874
        %v1876 = vpop.f32.mrf.mxu0
        %1877 = vmatprep.mubr.f32.mxu0 0.0
        %1878 = vmatmul.mubr.f32.gmra.mxu0 %v1733
        %v1879 = vpop.f32.mrf.mxu0
        %v1880 = vadd.f32 0.0, %v1879
        %v1881 = vpop.f32.mrf.mxu0
        %1882 = vmatprep.mubr.f32.mxu0 0.0
        %1883 = vmatmul.mubr.f32.gmra.mxu0 %v1734
        %v1884 = vpop.f32.mrf.mxu0
        %v1885 = vadd.f32 0.0, %v1884
        %v1886 = vpop.f32.mrf.mxu0
        %1887 = vmatprep.mubr.f32.mxu0 0.0
        %1888 = vmatmul.mubr.f32.gmra.mxu0 %v1735
        %v1889 = vpop.f32.mrf.mxu0
        %v1890 = vadd.f32 0.0, %v1889
        %v1891 = vpop.f32.mrf.mxu0
        %1892 = vmatprep.mubr.f32.mxu0 0.0
        %1893 = vmatmul.mubr.f32.gmra.mxu0 %v1736
        %v1894 = vpop.f32.mrf.mxu0
        %v1895 = vadd.f32 0.0, %v1894
        %v1896 = vpop.f32.mrf.mxu0
        %1897 = vmatprep.mubr.f32.mxu0 0.0
        %1898 = vmatmul.mubr.f32.gmra.mxu0 %v1737
        %v1899 = vpop.f32.mrf.mxu0
        %v1900 = vadd.f32 0.0, %v1899
        %v1901 = vpop.f32.mrf.mxu0
        %1902 = vmatprep.mubr.f32.mxu0 0.0
        %1903 = vmatmul.mubr.f32.gmra.mxu0 %v1738
        %v1904 = vpop.f32.mrf.mxu0
        %v1905 = vadd.f32 0.0, %v1904
        %v1906 = vpop.f32.mrf.mxu0
        %1907 = vmatprep.mubr.f32.mxu0 0.0
        %1908 = vmatmul.mubr.f32.gmra.mxu0 %v1739
        %v1909 = vpop.f32.mrf.mxu0
        %v1910 = vadd.f32 0.0, %v1909
        %v1911 = vpop.f32.mrf.mxu0
        %1912 = vmatprep.mubr.f32.mxu0 0.0
        %1913 = vmatmul.mubr.f32.gmra.mxu0 %v1740
        %v1914 = vpop.f32.mrf.mxu0
        %v1915 = vadd.f32 0.0, %v1914
        %v1916 = vpop.f32.mrf.mxu0
        %1917 = vdwg.mxu0
        %v1918 = vmul.f32 %v1840, 0.17677669
        %v1919 = vmul.f32 %v1845, 0.17677669
        %v1920 = vmul.f32 %v1850, 0.17677669
        %v1921 = vmul.f32 %v1855, 0.17677669
        %v1922 = vmul.f32 %v1860, 0.17677669
        %v1923 = vmul.f32 %v1865, 0.17677669
        %v1924 = vmul.f32 %v1870, 0.17677669
        %v1925 = vmul.f32 %v1875, 0.17677669
        %v1926 = vmul.f32 %v1880, 0.17677669
        %v1927 = vmul.f32 %v1885, 0.17677669
        %v1928 = vmul.f32 %v1890, 0.17677669
        %v1929 = vmul.f32 %v1895, 0.17677669
        %v1930 = vmul.f32 %v1900, 0.17677669
        %v1931 = vmul.f32 %v1905, 0.17677669
        %v1932 = vmul.f32 %v1910, 0.17677669
        %v1933 = vmul.f32 %v1915, 0.17677669
        %v1934 = vmax.f32 %v1918, -5.0
        %v1935 = vmax.f32 %v1919, -5.0
        %v1936 = vmax.f32 %v1920, -5.0
        %v1937 = vmax.f32 %v1921, -5.0
        %v1938 = vmax.f32 %v1922, -5.0
        %v1939 = vmax.f32 %v1923, -5.0
        %v1940 = vmax.f32 %v1924, -5.0
        %v1941 = vmax.f32 %v1925, -5.0
        %v1942 = vmax.f32 %v1926, -5.0
        %v1943 = vmax.f32 %v1927, -5.0
        %v1944 = vmax.f32 %v1928, -5.0
        %v1945 = vmax.f32 %v1929, -5.0
        %v1946 = vmax.f32 %v1930, -5.0
        %v1947 = vmax.f32 %v1931, -5.0
        %v1948 = vmax.f32 %v1932, -5.0
        %v1949 = vmax.f32 %v1933, -5.0
        %v1950 = vmin.f32 %v1934, 5.0
        %v1951 = vmin.f32 %v1935, 5.0
        %v1952 = vmin.f32 %v1936, 5.0
        %v1953 = vmin.f32 %v1937, 5.0
        %v1954 = vmin.f32 %v1938, 5.0
        %v1955 = vmin.f32 %v1939, 5.0
        %v1956 = vmin.f32 %v1940, 5.0
        %v1957 = vmin.f32 %v1941, 5.0
        %v1958 = vmin.f32 %v1942, 5.0
        %v1959 = vmin.f32 %v1943, 5.0
        %v1960 = vmin.f32 %v1944, 5.0
        %v1961 = vmin.f32 %v1945, 5.0
        %v1962 = vmin.f32 %v1946, 5.0
        %v1963 = vmin.f32 %v1947, 5.0
        %v1964 = vmin.f32 %v1948, 5.0
        %v1965 = vmin.f32 %v1949, 5.0
        %v1966 = vmul.f32 %v1950, 1.442695
        %v1967 = vpow.pop %v1966
        %v1968 = vmul.f32 %v1951, 1.442695
        %v1969 = vpow.pop %v1968
        %v1970 = vmul.f32 %v1952, 1.442695
        %v1971 = vpow.pop %v1970
        %v1972 = vmul.f32 %v1953, 1.442695
        %v1973 = vpow.pop %v1972
        %v1974 = vmul.f32 %v1954, 1.442695
        %v1975 = vpow.pop %v1974
        %v1976 = vmul.f32 %v1955, 1.442695
        %v1977 = vpow.pop %v1976
        %v1978 = vmul.f32 %v1956, 1.442695
        %v1979 = vpow.pop %v1978
        %v1980 = vmul.f32 %v1957, 1.442695
        %v1981 = vpow.pop %v1980
        %v1982 = vmul.f32 %v1958, 1.442695
        %v1983 = vpow.pop %v1982
        %v1984 = vmul.f32 %v1959, 1.442695
        %v1985 = vpow.pop %v1984
        %v1986 = vmul.f32 %v1960, 1.442695
        %v1987 = vpow.pop %v1986
        %v1988 = vmul.f32 %v1961, 1.442695
        %v1989 = vpow.pop %v1988
        %v1990 = vmul.f32 %v1962, 1.442695
        %v1991 = vpow.pop %v1990
        %v1992 = vmul.f32 %v1963, 1.442695
        %v1993 = vpow.pop %v1992
        %v1994 = vmul.f32 %v1964, 1.442695
        %v1995 = vpow.pop %v1994
        %v1996 = vmul.f32 %v1965, 1.442695
        %v1997 = vpow.pop %v1996
        %v1998 = vld [vmem:[%s10] sm:$0xf]
        %vm1999 = vcmask 31744
        %v2001 = vsel %vm1999, %v1967, 0
        %v2004 = vsel %vm1999, %v1969, 0
        %v2007 = vsel %vm1999, %v1971, 0
        %v2010 = vsel %vm1999, %v1973, 0
        %v2013 = vsel %vm1999, %v1975, 0
        %v2016 = vsel %vm1999, %v1977, 0
        %v2019 = vsel %vm1999, %v1979, 0
        %v2022 = vsel %vm1999, %v1981, 0
        %v2025 = vsel %vm1999, %v1983, 0
        %v2028 = vsel %vm1999, %v1985, 0
        %v2031 = vsel %vm1999, %v1987, 0
        %v2034 = vsel %vm1999, %v1989, 0
        %v2037 = vsel %vm1999, %v1991, 0
        %v2040 = vsel %vm1999, %v1993, 0
        %v2043 = vsel %vm1999, %v1995, 0
        %v2046 = vsel %vm1999, %v1997, 0
        %vm2048 = vcmask 1043456
        %v2050 = vsel %vm2048, %v1998, 0
        %2052 = vmatprep.subr.mxu0 0.0
        %2053 = vmatpush1.msra.mxu0 0.0
        %2054 = vmatprep.subr.mxu0 0.0
        %2055 = vmatpush1.msra.mxu0 0.0
        %2056 = vmatprep.subr.mxu0 0.0
        %2057 = vmatpush1.msra.mxu0 0.0
        %2058 = vmatprep.subr.mxu0 0.0
        %2059 = vmatpush1.msra.mxu0 0.0
        %2060 = vmatprep.subr.mxu0 0.0
        %2061 = vmatpush1.msra.mxu0 0.0
        %2062 = vmatprep.subr.mxu0 0.0
        %2063 = vmatpush1.msra.mxu0 0.0
        %2064 = vmatprep.subr.mxu0 0.0
        %2065 = vmatpush1.msra.mxu0 0.0
        %2066 = vmatprep.subr.mxu0 0.0
        %2067 = vmatpush1.msra.mxu0 0.0
        %2068 = vmatprep.subr.mxu0 0.0
        %2069 = vmatpush1.msra.mxu0 0.0
        %2070 = vmatprep.subr.mxu0 0.0
        %2071 = vmatpush1.msra.mxu0 0.0
        %2072 = vmatprep.subr.mxu0 0.0
        %2073 = vmatpush1.msra.mxu0 0.0
        %2074 = vmatprep.subr.mxu0 0.0
        %2075 = vmatpush1.msra.mxu0 0.0
        %2076 = vmatprep.subr.mxu0 0.0
        %2077 = vmatpush1.msra.mxu0 0.0
        %2078 = vmatprep.subr.mxu0 0.0
        %2079 = vmatpush1.msra.mxu0 0.0
        %2080 = vmatprep.subr.mxu0 0.0
        %2081 = vmatpush1.msra.mxu0 0.0
        %2082 = vmatprep.subr.mxu0 0.0
        %2083 = vmatpush1.msra.mxu0 %v2050
        %2084 = vmatprep.subr.mxu0 0.0
        %2085 = vmatpush2.msra.mxu0 0.0
        %2086 = vmatprep.subr.mxu0 0.0
        %2087 = vmatpush2.msra.mxu0 0.0
        %2088 = vmatprep.subr.mxu0 0.0
        %2089 = vmatpush2.msra.mxu0 0.0
        %2090 = vmatprep.subr.mxu0 0.0
        %2091 = vmatpush2.msra.mxu0 0.0
        %2092 = vmatprep.subr.mxu0 0.0
        %2093 = vmatpush2.msra.mxu0 0.0
        %2094 = vmatprep.subr.mxu0 0.0
        %2095 = vmatpush2.msra.mxu0 0.0
        %2096 = vmatprep.subr.mxu0 0.0
        %2097 = vmatpush2.msra.mxu0 0.0
        %2098 = vmatprep.subr.mxu0 0.0
        %2099 = vmatpush2.msra.mxu0 0.0
        %2100 = vmatprep.subr.mxu0 0.0
        %2101 = vmatpush2.msra.mxu0 0.0
        %2102 = vmatprep.subr.mxu0 0.0
        %2103 = vmatpush2.msra.mxu0 0.0
        %2104 = vmatprep.subr.mxu0 0.0
        %2105 = vmatpush2.msra.mxu0 0.0
        %2106 = vmatprep.subr.mxu0 0.0
        %2107 = vmatpush2.msra.mxu0 0.0
        %2108 = vmatprep.subr.mxu0 0.0
        %2109 = vmatpush2.msra.mxu0 0.0
        %2110 = vmatprep.subr.mxu0 0.0
        %2111 = vmatpush2.msra.mxu0 0.0
        %2112 = vmatprep.subr.mxu0 0.0
        %2113 = vmatpush2.msra.mxu0 0.0
        %2114 = vmatprep.subr.mxu0 0.0
        %2115 = vmatpush2.msra.mxu0 0.0
        %2116 = vmatprep.mubr.f32.mxu0 0.0
        %2117 = vmatmul.mubr.f32.gmra.mxu0 %v2001
        %v2118 = vpop.f32.mrf.mxu0
        %v2119 = vadd.f32 0.0, %v2118
        %v2120 = vpop.f32.mrf.mxu0
        %2121 = vmatprep.mubr.f32.mxu0 0.0
        %2122 = vmatmul.mubr.f32.gmra.mxu0 %v2004
        %v2123 = vpop.f32.mrf.mxu0
        %v2124 = vadd.f32 0.0, %v2123
        %v2125 = vpop.f32.mrf.mxu0
        %2126 = vmatprep.mubr.f32.mxu0 0.0
        %2127 = vmatmul.mubr.f32.gmra.mxu0 %v2007
        %v2128 = vpop.f32.mrf.mxu0
        %v2129 = vadd.f32 0.0, %v2128
        %v2130 = vpop.f32.mrf.mxu0
        %2131 = vmatprep.mubr.f32.mxu0 0.0
        %2132 = vmatmul.mubr.f32.gmra.mxu0 %v2010
        %v2133 = vpop.f32.mrf.mxu0
        %v2134 = vadd.f32 0.0, %v2133
        %v2135 = vpop.f32.mrf.mxu0
        %2136 = vmatprep.mubr.f32.mxu0 0.0
        %2137 = vmatmul.mubr.f32.gmra.mxu0 %v2013
        %v2138 = vpop.f32.mrf.mxu0
        %v2139 = vadd.f32 0.0, %v2138
        %v2140 = vpop.f32.mrf.mxu0
        %2141 = vmatprep.mubr.f32.mxu0 0.0
        %2142 = vmatmul.mubr.f32.gmra.mxu0 %v2016
        %v2143 = vpop.f32.mrf.mxu0
        %v2144 = vadd.f32 0.0, %v2143
        %v2145 = vpop.f32.mrf.mxu0
        %2146 = vmatprep.mubr.f32.mxu0 0.0
        %2147 = vmatmul.mubr.f32.gmra.mxu0 %v2019
        %v2148 = vpop.f32.mrf.mxu0
        %v2149 = vadd.f32 0.0, %v2148
        %v2150 = vpop.f32.mrf.mxu0
        %2151 = vmatprep.mubr.f32.mxu0 0.0
        %2152 = vmatmul.mubr.f32.gmra.mxu0 %v2022
        %v2153 = vpop.f32.mrf.mxu0
        %v2154 = vadd.f32 0.0, %v2153
        %v2155 = vpop.f32.mrf.mxu0
        %2156 = vmatprep.mubr.f32.mxu0 0.0
        %2157 = vmatmul.mubr.f32.gmra.mxu0 %v2025
        %v2158 = vpop.f32.mrf.mxu0
        %v2159 = vadd.f32 0.0, %v2158
        %v2160 = vpop.f32.mrf.mxu0
        %2161 = vmatprep.mubr.f32.mxu0 0.0
        %2162 = vmatmul.mubr.f32.gmra.mxu0 %v2028
        %v2163 = vpop.f32.mrf.mxu0
        %v2164 = vadd.f32 0.0, %v2163
        %v2165 = vpop.f32.mrf.mxu0
        %2166 = vmatprep.mubr.f32.mxu0 0.0
        %2167 = vmatmul.mubr.f32.gmra.mxu0 %v2031
        %v2168 = vpop.f32.mrf.mxu0
        %v2169 = vadd.f32 0.0, %v2168
        %v2170 = vpop.f32.mrf.mxu0
        %2171 = vmatprep.mubr.f32.mxu0 0.0
        %2172 = vmatmul.mubr.f32.gmra.mxu0 %v2034
        %v2173 = vpop.f32.mrf.mxu0
        %v2174 = vadd.f32 0.0, %v2173
        %v2175 = vpop.f32.mrf.mxu0
        %2176 = vmatprep.mubr.f32.mxu0 0.0
        %2177 = vmatmul.mubr.f32.gmra.mxu0 %v2037
        %v2178 = vpop.f32.mrf.mxu0
        %v2179 = vadd.f32 0.0, %v2178
        %v2180 = vpop.f32.mrf.mxu0
        %2181 = vmatprep.mubr.f32.mxu0 0.0
        %2182 = vmatmul.mubr.f32.gmra.mxu0 %v2040
        %v2183 = vpop.f32.mrf.mxu0
        %v2184 = vadd.f32 0.0, %v2183
        %v2185 = vpop.f32.mrf.mxu0
        %2186 = vmatprep.mubr.f32.mxu0 0.0
        %2187 = vmatmul.mubr.f32.gmra.mxu0 %v2043
        %v2188 = vpop.f32.mrf.mxu0
        %v2189 = vadd.f32 0.0, %v2188
        %v2190 = vpop.f32.mrf.mxu0
        %2191 = vmatprep.mubr.f32.mxu0 0.0
        %2192 = vmatmul.mubr.f32.gmra.mxu0 %v2046
        %v2193 = vpop.f32.mrf.mxu0
        %v2194 = vadd.f32 0.0, %v2193
        %v2195 = vpop.f32.mrf.mxu0
        %2196 = vdwg.mxu0
        %v2197 = vadd.f32 %v1424, %v1725
        %v2198 = vadd.f32 %v1430, %v1726
        %v2199 = vadd.f32 %v1436, %v1727
        %v2200 = vadd.f32 %v1442, %v1728
        %v2201 = vadd.f32 %v1448, %v1729
        %v2202 = vadd.f32 %v1454, %v1730
        %v2203 = vadd.f32 %v1460, %v1731
        %v2204 = vadd.f32 %v1466, %v1732
        %v2205 = vadd.f32 %v1472, %v1733
        %v2206 = vadd.f32 %v1478, %v1734
        %v2207 = vadd.f32 %v1484, %v1735
        %v2208 = vadd.f32 %v1490, %v1736
        %v2209 = vadd.f32 %v1496, %v1737
        %v2210 = vadd.f32 %v1502, %v1738
        %v2211 = vadd.f32 %v1508, %v1739
        %v2212 = vadd.f32 %v1514, %v1740
        %v2213 = vmul.f32 %v2197, %v2119
        %v2214 = vmul.f32 %v2198, %v2124
        %v2215 = vmul.f32 %v2199, %v2129
        %v2216 = vmul.f32 %v2200, %v2134
        %v2217 = vmul.f32 %v2201, %v2139
        %v2218 = vmul.f32 %v2202, %v2144
        %v2219 = vmul.f32 %v2203, %v2149
        %v2220 = vmul.f32 %v2204, %v2154
        %v2221 = vmul.f32 %v2205, %v2159
        %v2222 = vmul.f32 %v2206, %v2164
        %v2223 = vmul.f32 %v2207, %v2169
        %v2224 = vmul.f32 %v2208, %v2174
        %v2225 = vmul.f32 %v2209, %v2179
        %v2226 = vmul.f32 %v2210, %v2184
        %v2227 = vmul.f32 %v2211, %v2189
        %v2228 = vmul.f32 %v2212, %v2194
        %v2229 = vld [vmem:[#allocation3] sm:$0xff]
        %v2230 = vld [vmem:[#allocation3 + $0x8] sm:$0xff]
        %v2231 = vld [vmem:[#allocation3 + $0x10] sm:$0xff]
        %v2232 = vld [vmem:[#allocation3 + $0x18] sm:$0xff]
        %v2233 = vld [vmem:[#allocation3 + $0x20] sm:$0xff]
        %v2234 = vld [vmem:[#allocation3 + $0x28] sm:$0xff]
        %v2235 = vld [vmem:[#allocation3 + $0x30] sm:$0xff]
        %v2236 = vld [vmem:[#allocation3 + $0x38] sm:$0xff]
        %2237 = vmatprep.subr.mxu0 0.0
        %2238 = vmatpush1.msra.mxu0 %v2228
        %2239 = vmatprep.subr.mxu0 0.0
        %2240 = vmatpush1.msra.mxu0 %v2227
        %2241 = vmatprep.subr.mxu0 0.0
        %2242 = vmatpush1.msra.mxu0 %v2226
        %2243 = vmatprep.subr.mxu0 0.0
        %2244 = vmatpush1.msra.mxu0 %v2225
        %2245 = vmatprep.subr.mxu0 0.0
        %2246 = vmatpush1.msra.mxu0 %v2224
        %2247 = vmatprep.subr.mxu0 0.0
        %2248 = vmatpush1.msra.mxu0 %v2223
        %2249 = vmatprep.subr.mxu0 0.0
        %2250 = vmatpush1.msra.mxu0 %v2222
        %2251 = vmatprep.subr.mxu0 0.0
        %2252 = vmatpush1.msra.mxu0 %v2221
        %2253 = vmatprep.subr.mxu0 0.0
        %2254 = vmatpush1.msra.mxu0 %v2220
        %2255 = vmatprep.subr.mxu0 0.0
        %2256 = vmatpush1.msra.mxu0 %v2219
        %2257 = vmatprep.subr.mxu0 0.0
        %2258 = vmatpush1.msra.mxu0 %v2218
        %2259 = vmatprep.subr.mxu0 0.0
        %2260 = vmatpush1.msra.mxu0 %v2217
        %2261 = vmatprep.subr.mxu0 0.0
        %2262 = vmatpush1.msra.mxu0 %v2216
        %2263 = vmatprep.subr.mxu0 0.0
        %2264 = vmatpush1.msra.mxu0 %v2215
        %2265 = vmatprep.subr.mxu0 0.0
        %2266 = vmatpush1.msra.mxu0 %v2214
        %2267 = vmatprep.subr.mxu0 0.0
        %2268 = vmatpush1.msra.mxu0 %v2213
        %2269 = vmatprep.subr.mxu0 0.0
        %2270 = vmatpush2.msra.mxu0 0.0
        %2271 = vmatprep.subr.mxu0 0.0
        %2272 = vmatpush2.msra.mxu0 0.0
        %2273 = vmatprep.subr.mxu0 0.0
        %2274 = vmatpush2.msra.mxu0 0.0
        %2275 = vmatprep.subr.mxu0 0.0
        %2276 = vmatpush2.msra.mxu0 0.0
        %2277 = vmatprep.subr.mxu0 0.0
        %2278 = vmatpush2.msra.mxu0 0.0
        %2279 = vmatprep.subr.mxu0 0.0
        %2280 = vmatpush2.msra.mxu0 0.0
        %2281 = vmatprep.subr.mxu0 0.0
        %2282 = vmatpush2.msra.mxu0 0.0
        %2283 = vmatprep.subr.mxu0 0.0
        %2284 = vmatpush2.msra.mxu0 0.0
        %2285 = vmatprep.subr.mxu0 0.0
        %2286 = vmatpush2.msra.mxu0 0.0
        %2287 = vmatprep.subr.mxu0 0.0
        %2288 = vmatpush2.msra.mxu0 0.0
        %2289 = vmatprep.subr.mxu0 0.0
        %2290 = vmatpush2.msra.mxu0 0.0
        %2291 = vmatprep.subr.mxu0 0.0
        %2292 = vmatpush2.msra.mxu0 0.0
        %2293 = vmatprep.subr.mxu0 0.0
        %2294 = vmatpush2.msra.mxu0 0.0
        %2295 = vmatprep.subr.mxu0 0.0
        %2296 = vmatpush2.msra.mxu0 0.0
        %2297 = vmatprep.subr.mxu0 0.0
        %2298 = vmatpush2.msra.mxu0 0.0
        %2299 = vmatprep.subr.mxu0 0.0
        %2300 = vmatpush2.msra.mxu0 0.0
        %2301 = vmatprep.mubr.f32.mxu0 0.0
        %2302 = vmatmul.mubr.f32.gmra.mxu0 %v1053
        %v2303 = vpop.f32.mrf.mxu0
        %v2304 = vadd.f32 0.0, %v2303
        %v2305 = vpop.f32.mrf.mxu0
        %2306 = vmatprep.mubr.f32.mxu0 0.0
        %2307 = vmatmul.mubr.f32.gmra.mxu0 %v1054
        %v2308 = vpop.f32.mrf.mxu0
        %v2309 = vadd.f32 0.0, %v2308
        %v2310 = vpop.f32.mrf.mxu0
        %2311 = vmatprep.mubr.f32.mxu0 0.0
        %2312 = vmatmul.mubr.f32.gmra.mxu0 %v1055
        %v2313 = vpop.f32.mrf.mxu0
        %v2314 = vadd.f32 0.0, %v2313
        %v2315 = vpop.f32.mrf.mxu0
        %2316 = vmatprep.mubr.f32.mxu0 0.0
        %2317 = vmatmul.mubr.f32.gmra.mxu0 %v1056
        %v2318 = vpop.f32.mrf.mxu0
        %v2319 = vadd.f32 0.0, %v2318
        %v2320 = vpop.f32.mrf.mxu0
        %2321 = vmatprep.mubr.f32.mxu0 0.0
        %2322 = vmatmul.mubr.f32.gmra.mxu0 %v1057
        %v2323 = vpop.f32.mrf.mxu0
        %v2324 = vadd.f32 0.0, %v2323
        %v2325 = vpop.f32.mrf.mxu0
        %2326 = vmatprep.mubr.f32.mxu0 0.0
        %2327 = vmatmul.mubr.f32.gmra.mxu0 %v1058
        %v2328 = vpop.f32.mrf.mxu0
        %v2329 = vadd.f32 0.0, %v2328
        %v2330 = vpop.f32.mrf.mxu0
        %2331 = vmatprep.mubr.f32.mxu0 0.0
        %2332 = vmatmul.mubr.f32.gmra.mxu0 %v1059
        %v2333 = vpop.f32.mrf.mxu0
        %v2334 = vadd.f32 0.0, %v2333
        %v2335 = vpop.f32.mrf.mxu0
        %2336 = vmatprep.mubr.f32.mxu0 0.0
        %2337 = vmatmul.mubr.f32.gmra.mxu0 %v1060
        %v2338 = vpop.f32.mrf.mxu0
        %v2339 = vadd.f32 0.0, %v2338
        %v2340 = vpop.f32.mrf.mxu0
        %2341 = vdwg.mxu0
        %v2342 = vadd.f32 %v2229, %v2304
        %v2343 = vadd.f32 %v2230, %v2309
        %v2344 = vadd.f32 %v2231, %v2314
        %v2345 = vadd.f32 %v2232, %v2319
        %v2346 = vadd.f32 %v2233, %v2324
        %v2347 = vadd.f32 %v2234, %v2329
        %v2348 = vadd.f32 %v2235, %v2334
        %v2349 = vadd.f32 %v2236, %v2339
        %2350 = vst [vmem:[#allocation3] sm:$0xff] %v2342
        %2351 = vst [vmem:[#allocation3 + $0x8] sm:$0xff] %v2343
        %2352 = vst [vmem:[#allocation3 + $0x10] sm:$0xff] %v2344
        %2353 = vst [vmem:[#allocation3 + $0x18] sm:$0xff] %v2345
        %2354 = vst [vmem:[#allocation3 + $0x20] sm:$0xff] %v2346
        %2355 = vst [vmem:[#allocation3 + $0x28] sm:$0xff] %v2347
        %2356 = vst [vmem:[#allocation3 + $0x30] sm:$0xff] %v2348
        %2357 = vst [vmem:[#allocation3 + $0x38] sm:$0xff] %v2349
        %v2358 = vld [vmem:[#allocation4] sm:$0xff]
        %v2359 = vld [vmem:[#allocation4 + $0x8] sm:$0xff]
        %v2360 = vld [vmem:[#allocation4 + $0x10] sm:$0xff]
        %v2361 = vld [vmem:[#allocation4 + $0x18] sm:$0xff]
        %v2362 = vld [vmem:[#allocation4 + $0x20] sm:$0xff]
        %v2363 = vld [vmem:[#allocation4 + $0x28] sm:$0xff]
        %v2364 = vld [vmem:[#allocation4 + $0x30] sm:$0xff]
        %v2365 = vld [vmem:[#allocation4 + $0x38] sm:$0xff]
        %2366 = vmatprep.subr.mxu0 0.0
        %2367 = vmatpush1.msra.mxu0 %v1997
        %2368 = vmatprep.subr.mxu0 0.0
        %2369 = vmatpush1.msra.mxu0 %v1995
        %2370 = vmatprep.subr.mxu0 0.0
        %2371 = vmatpush1.msra.mxu0 %v1993
        %2372 = vmatprep.subr.mxu0 0.0
        %2373 = vmatpush1.msra.mxu0 %v1991
        %2374 = vmatprep.subr.mxu0 0.0
        %2375 = vmatpush1.msra.mxu0 %v1989
        %2376 = vmatprep.subr.mxu0 0.0
        %2377 = vmatpush1.msra.mxu0 %v1987
        %2378 = vmatprep.subr.mxu0 0.0
        %2379 = vmatpush1.msra.mxu0 %v1985
        %2380 = vmatprep.subr.mxu0 0.0
        %2381 = vmatpush1.msra.mxu0 %v1983
        %2382 = vmatprep.subr.mxu0 0.0
        %2383 = vmatpush1.msra.mxu0 %v1981
        %2384 = vmatprep.subr.mxu0 0.0
        %2385 = vmatpush1.msra.mxu0 %v1979
        %2386 = vmatprep.subr.mxu0 0.0
        %2387 = vmatpush1.msra.mxu0 %v1977
        %2388 = vmatprep.subr.mxu0 0.0
        %2389 = vmatpush1.msra.mxu0 %v1975
        %2390 = vmatprep.subr.mxu0 0.0
        %2391 = vmatpush1.msra.mxu0 %v1973
        %2392 = vmatprep.subr.mxu0 0.0
        %2393 = vmatpush1.msra.mxu0 %v1971
        %2394 = vmatprep.subr.mxu0 0.0
        %2395 = vmatpush1.msra.mxu0 %v1969
        %2396 = vmatprep.subr.mxu0 0.0
        %2397 = vmatpush1.msra.mxu0 %v1967
        %2398 = vmatprep.subr.mxu0 0.0
        %2399 = vmatpush2.msra.mxu0 0.0
        %2400 = vmatprep.subr.mxu0 0.0
        %2401 = vmatpush2.msra.mxu0 0.0
        %2402 = vmatprep.subr.mxu0 0.0
        %2403 = vmatpush2.msra.mxu0 0.0
        %2404 = vmatprep.subr.mxu0 0.0
        %2405 = vmatpush2.msra.mxu0 0.0
        %2406 = vmatprep.subr.mxu0 0.0
        %2407 = vmatpush2.msra.mxu0 0.0
        %2408 = vmatprep.subr.mxu0 0.0
        %2409 = vmatpush2.msra.mxu0 0.0
        %2410 = vmatprep.subr.mxu0 0.0
        %2411 = vmatpush2.msra.mxu0 0.0
        %2412 = vmatprep.subr.mxu0 0.0
        %2413 = vmatpush2.msra.mxu0 0.0
        %2414 = vmatprep.subr.mxu0 0.0
        %2415 = vmatpush2.msra.mxu0 0.0
        %2416 = vmatprep.subr.mxu0 0.0
        %2417 = vmatpush2.msra.mxu0 0.0
        %2418 = vmatprep.subr.mxu0 0.0
        %2419 = vmatpush2.msra.mxu0 0.0
        %2420 = vmatprep.subr.mxu0 0.0
        %2421 = vmatpush2.msra.mxu0 0.0
        %2422 = vmatprep.subr.mxu0 0.0
        %2423 = vmatpush2.msra.mxu0 0.0
        %2424 = vmatprep.subr.mxu0 0.0
        %2425 = vmatpush2.msra.mxu0 0.0
        %2426 = vmatprep.subr.mxu0 0.0
        %2427 = vmatpush2.msra.mxu0 0.0
        %2428 = vmatprep.subr.mxu0 0.0
        %2429 = vmatpush2.msra.mxu0 0.0
        %2430 = vmatprep.mubr.f32.mxu0 0.0
        %2431 = vmatmul.mubr.f32.gmra.mxu0 %v1053
        %v2432 = vpop.f32.mrf.mxu0
        %v2433 = vadd.f32 0.0, %v2432
        %v2434 = vpop.f32.mrf.mxu0
        %2435 = vmatprep.mubr.f32.mxu0 0.0
        %2436 = vmatmul.mubr.f32.gmra.mxu0 %v1054
        %v2437 = vpop.f32.mrf.mxu0
        %v2438 = vadd.f32 0.0, %v2437
        %v2439 = vpop.f32.mrf.mxu0
        %2440 = vmatprep.mubr.f32.mxu0 0.0
        %2441 = vmatmul.mubr.f32.gmra.mxu0 %v1055
        %v2442 = vpop.f32.mrf.mxu0
        %v2443 = vadd.f32 0.0, %v2442
        %v2444 = vpop.f32.mrf.mxu0
        %2445 = vmatprep.mubr.f32.mxu0 0.0
        %2446 = vmatmul.mubr.f32.gmra.mxu0 %v1056
        %v2447 = vpop.f32.mrf.mxu0
        %v2448 = vadd.f32 0.0, %v2447
        %v2449 = vpop.f32.mrf.mxu0
        %2450 = vmatprep.mubr.f32.mxu0 0.0
        %2451 = vmatmul.mubr.f32.gmra.mxu0 %v1057
        %v2452 = vpop.f32.mrf.mxu0
        %v2453 = vadd.f32 0.0, %v2452
        %v2454 = vpop.f32.mrf.mxu0
        %2455 = vmatprep.mubr.f32.mxu0 0.0
        %2456 = vmatmul.mubr.f32.gmra.mxu0 %v1058
        %v2457 = vpop.f32.mrf.mxu0
        %v2458 = vadd.f32 0.0, %v2457
        %v2459 = vpop.f32.mrf.mxu0
        %2460 = vmatprep.mubr.f32.mxu0 0.0
        %2461 = vmatmul.mubr.f32.gmra.mxu0 %v1059
        %v2462 = vpop.f32.mrf.mxu0
        %v2463 = vadd.f32 0.0, %v2462
        %v2464 = vpop.f32.mrf.mxu0
        %2465 = vmatprep.mubr.f32.mxu0 0.0
        %2466 = vmatmul.mubr.f32.gmra.mxu0 %v1060
        %v2467 = vpop.f32.mrf.mxu0
        %v2468 = vadd.f32 0.0, %v2467
        %v2469 = vpop.f32.mrf.mxu0
        %2470 = vdwg.mxu0
        %v2471 = vadd.f32 %v2358, %v2433
        %v2472 = vadd.f32 %v2359, %v2438
        %v2473 = vadd.f32 %v2360, %v2443
        %v2474 = vadd.f32 %v2361, %v2448
        %v2475 = vadd.f32 %v2362, %v2453
        %v2476 = vadd.f32 %v2363, %v2458
        %v2477 = vadd.f32 %v2364, %v2463
        %v2478 = vadd.f32 %v2365, %v2468
        %2479 = vst.msk [vmem:[#allocation4] sm:$0xff] %vm1999, %v2471
        %2480 = vst.msk [vmem:[#allocation4 + $0x8] sm:$0xff] %vm1999, %v2472
        %2481 = vst.msk [vmem:[#allocation4 + $0x10] sm:$0xff] %vm1999, %v2473
        %2482 = vst.msk [vmem:[#allocation4 + $0x18] sm:$0xff] %vm1999, %v2474
        %2483 = vst.msk [vmem:[#allocation4 + $0x20] sm:$0xff] %vm1999, %v2475
        %2484 = vst.msk [vmem:[#allocation4 + $0x28] sm:$0xff] %vm1999, %v2476
        %2485 = vst.msk [vmem:[#allocation4 + $0x30] sm:$0xff] %vm1999, %v2477
        %2486 = vst.msk [vmem:[#allocation4 + $0x38] sm:$0xff] %vm1999, %v2478
        %p2487 = scmp.eq.s32.totalorder %s28, 1
        // Predicated region
        $region69: #{tpu_custom_call.1} parent=63 // pred_check
          %p2488 = pneg %p2487
        $region70: #{tpu_custom_call.1} parent=63 // pred_check_branch
          %2490 = sbr.rel (%p2488) target = $region72
        $region71: #{tpu_custom_call.1} parent=63 // pred_region
          %v2491 = vld [vmem:[#allocation4] sm:$0xff]
          %v2492 = vld [vmem:[#allocation4 + $0x8] sm:$0xff]
          %v2493 = vld [vmem:[#allocation4 + $0x10] sm:$0xff]
          %v2494 = vld [vmem:[#allocation4 + $0x18] sm:$0xff]
          %v2495 = vld [vmem:[#allocation4 + $0x20] sm:$0xff]
          %v2496 = vld [vmem:[#allocation4 + $0x28] sm:$0xff]
          %v2497 = vld [vmem:[#allocation4 + $0x30] sm:$0xff]
          %v2498 = vld [vmem:[#allocation4 + $0x38] sm:$0xff]
          %v2499 = vadd.f32 %v2491, 1e-16
          %v2500 = vadd.f32 %v2492, 1e-16
          %v2501 = vadd.f32 %v2493, 1e-16
          %v2502 = vadd.f32 %v2494, 1e-16
          %v2503 = vadd.f32 %v2495, 1e-16
          %v2504 = vadd.f32 %v2496, 1e-16
          %v2505 = vadd.f32 %v2497, 1e-16
          %v2506 = vadd.f32 %v2498, 1e-16
          %v2507 = vrcp.pop %v2499
          %v2508 = vrcp.pop %v2500
          %v2509 = vrcp.pop %v2501
          %v2510 = vrcp.pop %v2502
          %v2511 = vrcp.pop %v2503
          %v2512 = vrcp.pop %v2504
          %v2513 = vrcp.pop %v2505
          %v2514 = vrcp.pop %v2506
          %v2515 = vld [vmem:[%s10] sm:$0xf]
          %v2517 = vsel %vm1999, %v2507, 0
          %v2520 = vsel %vm1999, %v2508, 0
          %v2523 = vsel %vm1999, %v2509, 0
          %v2526 = vsel %vm1999, %v2510, 0
          %v2529 = vsel %vm1999, %v2511, 0
          %v2532 = vsel %vm1999, %v2512, 0
          %v2535 = vsel %vm1999, %v2513, 0
          %v2538 = vsel %vm1999, %v2514, 0
          %v2541 = vsel %vm2048, %v2515, 0
          %2543 = vmatprep.subr.mxu0 0.0
          %2544 = vmatpush1.msra.mxu0 0.0
          %2545 = vmatprep.subr.mxu0 0.0
          %2546 = vmatpush1.msra.mxu0 0.0
          %2547 = vmatprep.subr.mxu0 0.0
          %2548 = vmatpush1.msra.mxu0 0.0
          %2549 = vmatprep.subr.mxu0 0.0
          %2550 = vmatpush1.msra.mxu0 0.0
          %2551 = vmatprep.subr.mxu0 0.0
          %2552 = vmatpush1.msra.mxu0 0.0
          %2553 = vmatprep.subr.mxu0 0.0
          %2554 = vmatpush1.msra.mxu0 0.0
          %2555 = vmatprep.subr.mxu0 0.0
          %2556 = vmatpush1.msra.mxu0 0.0
          %2557 = vmatprep.subr.mxu0 0.0
          %2558 = vmatpush1.msra.mxu0 0.0
          %2559 = vmatprep.subr.mxu0 0.0
          %2560 = vmatpush1.msra.mxu0 0.0
          %2561 = vmatprep.subr.mxu0 0.0
          %2562 = vmatpush1.msra.mxu0 0.0
          %2563 = vmatprep.subr.mxu0 0.0
          %2564 = vmatpush1.msra.mxu0 0.0
          %2565 = vmatprep.subr.mxu0 0.0
          %2566 = vmatpush1.msra.mxu0 0.0
          %2567 = vmatprep.subr.mxu0 0.0
          %2568 = vmatpush1.msra.mxu0 0.0
          %2569 = vmatprep.subr.mxu0 0.0
          %2570 = vmatpush1.msra.mxu0 0.0
          %2571 = vmatprep.subr.mxu0 0.0
          %2572 = vmatpush1.msra.mxu0 0.0
          %2573 = vmatprep.subr.mxu0 0.0
          %2574 = vmatpush1.msra.mxu0 %v2541
          %2575 = vmatprep.subr.mxu0 0.0
          %2576 = vmatpush2.msra.mxu0 0.0
          %2577 = vmatprep.subr.mxu0 0.0
          %2578 = vmatpush2.msra.mxu0 0.0
          %2579 = vmatprep.subr.mxu0 0.0
          %2580 = vmatpush2.msra.mxu0 0.0
          %2581 = vmatprep.subr.mxu0 0.0
          %2582 = vmatpush2.msra.mxu0 0.0
          %2583 = vmatprep.subr.mxu0 0.0
          %2584 = vmatpush2.msra.mxu0 0.0
          %2585 = vmatprep.subr.mxu0 0.0
          %2586 = vmatpush2.msra.mxu0 0.0
          %2587 = vmatprep.subr.mxu0 0.0
          %2588 = vmatpush2.msra.mxu0 0.0
          %2589 = vmatprep.subr.mxu0 0.0
          %2590 = vmatpush2.msra.mxu0 0.0
          %2591 = vmatprep.subr.mxu0 0.0
          %2592 = vmatpush2.msra.mxu0 0.0
          %2593 = vmatprep.subr.mxu0 0.0
          %2594 = vmatpush2.msra.mxu0 0.0
          %2595 = vmatprep.subr.mxu0 0.0
          %2596 = vmatpush2.msra.mxu0 0.0
          %2597 = vmatprep.subr.mxu0 0.0
          %2598 = vmatpush2.msra.mxu0 0.0
          %2599 = vmatprep.subr.mxu0 0.0
          %2600 = vmatpush2.msra.mxu0 0.0
          %2601 = vmatprep.subr.mxu0 0.0
          %2602 = vmatpush2.msra.mxu0 0.0
          %2603 = vmatprep.subr.mxu0 0.0
          %2604 = vmatpush2.msra.mxu0 0.0
          %2605 = vmatprep.subr.mxu0 0.0
          %2606 = vmatpush2.msra.mxu0 0.0
          %2607 = vmatprep.mubr.f32.mxu0 0.0
          %2608 = vmatmul.mubr.f32.gmra.mxu0 %v2517
          %v2609 = vpop.f32.mrf.mxu0
          %v2610 = vadd.f32 0.0, %v2609
          %v2611 = vpop.f32.mrf.mxu0
          %2612 = vmatprep.mubr.f32.mxu0 0.0
          %2613 = vmatmul.mubr.f32.gmra.mxu0 %v2520
          %v2614 = vpop.f32.mrf.mxu0
          %v2615 = vadd.f32 0.0, %v2614
          %v2616 = vpop.f32.mrf.mxu0
          %2617 = vmatprep.mubr.f32.mxu0 0.0
          %2618 = vmatmul.mubr.f32.gmra.mxu0 %v2523
          %v2619 = vpop.f32.mrf.mxu0
          %v2620 = vadd.f32 0.0, %v2619
          %v2621 = vpop.f32.mrf.mxu0
          %2622 = vmatprep.mubr.f32.mxu0 0.0
          %2623 = vmatmul.mubr.f32.gmra.mxu0 %v2526
          %v2624 = vpop.f32.mrf.mxu0
          %v2625 = vadd.f32 0.0, %v2624
          %v2626 = vpop.f32.mrf.mxu0
          %2627 = vmatprep.mubr.f32.mxu0 0.0
          %2628 = vmatmul.mubr.f32.gmra.mxu0 %v2529
          %v2629 = vpop.f32.mrf.mxu0
          %v2630 = vadd.f32 0.0, %v2629
          %v2631 = vpop.f32.mrf.mxu0
          %2632 = vmatprep.mubr.f32.mxu0 0.0
          %2633 = vmatmul.mubr.f32.gmra.mxu0 %v2532
          %v2634 = vpop.f32.mrf.mxu0
          %v2635 = vadd.f32 0.0, %v2634
          %v2636 = vpop.f32.mrf.mxu0
          %2637 = vmatprep.mubr.f32.mxu0 0.0
          %2638 = vmatmul.mubr.f32.gmra.mxu0 %v2535
          %v2639 = vpop.f32.mrf.mxu0
          %v2640 = vadd.f32 0.0, %v2639
          %v2641 = vpop.f32.mrf.mxu0
          %2642 = vmatprep.mubr.f32.mxu0 0.0
          %2643 = vmatmul.mubr.f32.gmra.mxu0 %v2538
          %v2644 = vpop.f32.mrf.mxu0
          %v2645 = vadd.f32 0.0, %v2644
          %v2646 = vpop.f32.mrf.mxu0
          %2647 = vdwg.mxu0
          %v2648 = vld [vmem:[#allocation3] sm:$0xff]
          %v2649 = vld [vmem:[#allocation3 + $0x8] sm:$0xff]
          %v2650 = vld [vmem:[#allocation3 + $0x10] sm:$0xff]
          %v2651 = vld [vmem:[#allocation3 + $0x18] sm:$0xff]
          %v2652 = vld [vmem:[#allocation3 + $0x20] sm:$0xff]
          %v2653 = vld [vmem:[#allocation3 + $0x28] sm:$0xff]
          %v2654 = vld [vmem:[#allocation3 + $0x30] sm:$0xff]
          %v2655 = vld [vmem:[#allocation3 + $0x38] sm:$0xff]
          %v2656 = vmul.f32 %v2648, %v2610
          %v2657 = vmul.f32 %v2649, %v2615
          %v2658 = vmul.f32 %v2650, %v2620
          %v2659 = vmul.f32 %v2651, %v2625
          %v2660 = vmul.f32 %v2652, %v2630
          %v2661 = vmul.f32 %v2653, %v2635
          %v2662 = vmul.f32 %v2654, %v2640
          %v2663 = vmul.f32 %v2655, %v2645
          %2664 = vst [vmem:[#allocation7] sm:$0xff] %v2656
          %2665 = vst [vmem:[#allocation7 + $0x8] sm:$0xff] %v2657
          %2666 = vst [vmem:[#allocation7 + $0x10] sm:$0xff] %v2658
          %2667 = vst [vmem:[#allocation7 + $0x18] sm:$0xff] %v2659
          %2668 = vst [vmem:[#allocation7 + $0x20] sm:$0xff] %v2660
          %2669 = vst [vmem:[#allocation7 + $0x28] sm:$0xff] %v2661
          %2670 = vst [vmem:[#allocation7 + $0x30] sm:$0xff] %v2662
          %2671 = vst [vmem:[#allocation7 + $0x38] sm:$0xff] %v2663
        $region72: #{tpu_custom_call.1} parent=63 // pred_fallthru
          _
        %s2672 = sand.u32 %s287, 1
        %s2673 = scalar_lea.sflag [#allocation6], %s2672
        %s2674 = sand.u32 %s287, 1
        %s2675 = smul.addr %s2674, 128
        %s2676 = scalar_lea.vmem [#allocation5], %s2675
        // Predicated region
        $region73: #{tpu_custom_call.1} parent=63 // pred_check
          %p2677 = pneg %p297
        $region74: #{tpu_custom_call.1} parent=63 // pred_check_branch
          %2679 = sbr.rel (%p2677) target = $region76
        $region75: #{tpu_custom_call.1} parent=63 // pred_region
          %s2680 = smul.u32 16, %s28
          %s2682 = ssub.s32 2048, 2048
          %2683 = vsyncadd %s2673, %s2682
          %s2684 = smul.addr %s2680, 128
          %s2685 = scalar_lea.hbm %s11, %s2684
          %s2686 = sshll.u32 %s2676, 4
          %s2687 = int_to_ptr.vmem [resolvable:$true] %s2686
          %2692 = dma.vmem_to_hbm [thread:$0]  %s2687, 2048, %s2685, %s2673, 128, 128, 8
        $region76: #{tpu_custom_call.1} parent=63 // pred_fallthru
          _
        // Predicated region
        $region77: #{tpu_custom_call.1} parent=63 // pred_check
          %p2693 = pneg %p318
        $region78: #{tpu_custom_call.1} parent=63 // pred_check_branch
          %2695 = sbr.rel (%p2693) target = $region80
        $region79: #{tpu_custom_call.1} parent=63 // pred_region
          %s2697 = ssub.s32 1024, 1024
          %2698 = vsyncadd [#allocation8], %s2697
          %s2699 = sshll.u32 [#allocation7], 4
          %s2700 = int_to_ptr.vmem [resolvable:$true] %s2699
          %2705 = dma.vmem_to_hbm [thread:$0]  %s2700, 1024, %s12, [#allocation8], 128, 128, 8
        $region80: #{tpu_custom_call.1} parent=63 // pred_fallthru
          _
        // Predicated region
        $region81: #{tpu_custom_call.1} parent=63 // pred_check
          %p2706 = pneg %p318
        $region82: #{tpu_custom_call.1} parent=63 // pred_check_branch
          %2708 = sbr.rel (%p2706) target = $region84
        $region83: #{tpu_custom_call.1} parent=63 // pred_region
          %2709 = dma.done [#allocation8], 1024
        $region84: #{tpu_custom_call.1} parent=63 // pred_fallthru
          _
      $region64: #{tpu_custom_call.1} parent=5 // pred_fallthru
        _
      %p2710 = scmp.le.s32.totalorder 2, %s23
      // Predicated region
      $region85: #{tpu_custom_call.1} parent=5 // pred_check
        %p2711 = pneg %p2710
      $region86: #{tpu_custom_call.1} parent=5 // pred_check_branch
        %2713 = sbr.rel (%p2711) target = $region88
      $region87: #{tpu_custom_call.1} parent=5 // pred_region
        %s2714 = ssub.s32 %s23, 2
        // Predicated region
        $region89: #{tpu_custom_call.1} parent=87 // pred_check
          %p2715 = pneg %p303
        $region90: #{tpu_custom_call.1} parent=87 // pred_check_branch
          %2717 = sbr.rel (%p2715) target = $region92
        $region91: #{tpu_custom_call.1} parent=87 // pred_region
          %s2718 = sand.u32 %s288, 1
          %s2719 = scalar_lea.sflag [#allocation6], %s2718
          %s2720 = sand.u32 %s288, 1
          %s2721 = smul.addr %s2720, 128
          %s2722 = scalar_lea.vmem [#allocation5], %s2721
          %2723 = dma.done %s2719, 2048
        $region92: #{tpu_custom_call.1} parent=87 // pred_fallthru
          _
      $region88: #{tpu_custom_call.1} parent=5 // pred_fallthru
        _
    $region6: #{tpu_custom_call.1} parent=1 // loop_footer
      %s27 = sadd.s32 1, %s23
    $region7: #{tpu_custom_call.1} parent=1 // loop_footer_branch
      %22 = sbr.rel target = $region3
    $region8: #{tpu_custom_call.1} parent=1 // loop_exit
      _
    %2724 = vsyncpa [#allocation6], 1
    %s2725 = scalar_lea.sflag [#allocation6], 1
    %2726 = vsyncpa %s2725, 1
    %2727 = vsyncpa [#allocation8], 1

</llo_original>
